<compile_context>
chip_gen: v5e
topology: v5e:2x2
jax: 0.10.0
libtpu: 0.0.40
codegen_flags: <defaults>
</compile_context>

<pallas_src>
import jax
import jax.numpy as jnp
from jax import lax
from jax.experimental import pallas as pl
from jax.experimental.pallas import tpu as pltpu

NEG_SLOPE = 0.01      # F.leaky_relu default
NEG_INF = -1e30       # finite sentinel -> 0*NEG_INF stays finite, exp underflows to 0
EPS = 1e-16


def _round_up(x, m):
    return ((x + m - 1) // m) * m


def _make_kernel(node_tile, edge_tile, n_r_p, r_hidden, dr_pad):
    f32 = jnp.float32
    nt = node_tile
    te = edge_tile

    def kernel(h_ref, t_ref, rrow_ref, rcol_ref, xe_ref, xr_ref, wht_ref, wr_ref,
               out_ref,
               s_ht, s_r, m_st, acc_h, acc_t):
        i_n = pl.program_id(0)
        i_e = pl.program_id(1)

        # ---- per-node-block init: projections + online-softmax state -------
        @pl.when(i_e == 0)
        def _init():
            # s_h / s_t for this node block: [2, nt] = w_ht . x_e_blk^T
            s_ht[...] = lax.dot_general(
                wht_ref[...], xe_ref[...],
                dimension_numbers=(((1,), (1,)), ((), ())),
                preferred_element_type=f32)
            # s_r row: [1, n_r_p] = w_r . x_r_aug^T  (pad / ones columns of
            # x_r_aug are zeroed in w_r, so they contribute nothing)
            s_r[...] = lax.dot_general(
                wr_ref[...], xr_ref[...],
                dimension_numbers=(((1,), (1,)), ((), ())),
                preferred_element_type=f32)
            m_st[...] = jnp.full_like(m_st, NEG_INF)
            acc_h[...] = jnp.zeros_like(acc_h)
            acc_t[...] = jnp.zeros_like(acc_t)

        # ---- per-tile one-hot masks rebuilt in VMEM from int32 indices -----
        blk_start = i_n * nt
        h_loc = h_ref[...] - blk_start          # [1, TE]  local node index
        t_loc = t_ref[...] - blk_start          # [1, TE]
        r_row = rrow_ref[...]                   # [1, TE]
        r_col = rcol_ref[...]                   # [TE, 1]

        iota_n = lax.broadcasted_iota(jnp.int32, (nt, te), 0)
        iota_r = lax.broadcasted_iota(jnp.int32, (n_r_p, te), 0)
        iota_rT = lax.broadcasted_iota(jnp.int32, (te, n_r_p), 1)

        mask_h = iota_n == h_loc                # [nt, TE] bool (out-of-block / pad -> all-false col)
        mask_t = iota_n == t_loc
        mask_hf = mask_h.astype(f32)
        mask_tf = mask_t.astype(f32)
        mask_rf = (iota_r == r_row).astype(f32)  # [n_r_p, TE]
        gr = (iota_rT == r_col).astype(f32)      # [TE, n_r_p]

        # ---- per-edge scores (MXU gathers), exp only on [1, TE] rows -------
        e_h = jnp.dot(s_ht[0:1, :], mask_hf, preferred_element_type=f32)  # [1, TE]
        e_t = jnp.dot(s_ht[1:2, :], mask_tf, preferred_element_type=f32)
        e_r = jnp.dot(s_r[...], mask_rf, preferred_element_type=f32)

        def leaky_relu(x):
            return jnp.where(x > 0, x, NEG_SLOPE * x)

        z_h = leaky_relu(e_h + e_r)             # [1, TE]
        z_t = leaky_relu(e_t + e_r)

        # per-edge relation features; column r_hidden is a ones column so the
        # softmax denominator l rides along inside the accumulation matmul.
        xr_tile = jnp.dot(gr, xr_ref[...], preferred_element_type=f32)  # [TE, Dp]

        ones_row = jnp.ones((1, nt), f32)
        m_prev = m_st[...]                      # [nt, 2]  (head | tail)

        def stream(z_row, mask_b, mask_f, m_prev_col):
            # per-node max of this tile's scores (lane reduce)
            zm = jnp.where(mask_b, z_row, NEG_INF)                 # [nt, TE]
            m_tile = jnp.max(zm, axis=1, keepdims=True)            # [nt, 1]
            m_new = jnp.maximum(m_prev_col, m_tile)
            scale = jnp.exp(m_prev_col - m_new)                    # [nt, 1]
            # per-edge gather of the running max via MXU (one-hot column sum)
            m_e = jnp.dot(ones_row, mask_f * m_new,
                          preferred_element_type=f32)              # [1, TE]
            p = jnp.exp(z_row - m_e)                               # [1, TE]
            w = jnp.where(mask_b, p, 0.0)                          # [nt, TE]
            return m_new, scale, w

        m_new_h, scale_h, w_h = stream(z_h, mask_h, mask_hf, m_prev[:, 0:1])
        m_new_t, scale_t, w_t = stream(z_t, mask_t, mask_tf, m_prev[:, 1:2])

        # ---- scatter-add aggregation on the MXU (l is the ones column) -----
        acc_h[...] = scale_h * acc_h[...] + jnp.dot(
            w_h, xr_tile, preferred_element_type=f32)
        acc_t[...] = scale_t * acc_t[...] + jnp.dot(
            w_t, xr_tile, preferred_element_type=f32)
        m_st[...] = jnp.concatenate([m_new_h, m_new_t], axis=1)

        # ---- finalize: normalize and write lane-dense halves ---------------
        @pl.when(i_e == pl.num_programs(1) - 1)
        def _fin():
            a_h = acc_h[...]
            a_t = acc_t[...]
            inv_h = pl.reciprocal(a_h[:, r_hidden:r_hidden + 1] + EPS,
                                  approx=False)
            inv_t = pl.reciprocal(a_t[:, r_hidden:r_hidden + 1] + EPS,
                                  approx=False)
            out_ref[:, 0:dr_pad] = a_h * inv_h
            out_ref[:, dr_pad:2 * dr_pad] = a_t * inv_t

    return kernel


def gat_r_to_e(x_e, x_r, w_h, w_t, w_r, edge_index_h, edge_index_t, rel,
               *, node_tile=256, edge_tile=256):
    """Wrapper: index/layout plumbing only; all activation math in the kernel."""
    n_e, e_hidden = x_e.shape
    n_r, r_hidden = x_r.shape
    n_edges = edge_index_h.shape[0]
    f32 = jnp.float32

    # ---- static tiling / padding geometry ---------------------------------
    edge_tile = max(128, _round_up(edge_tile, 128))
    nt = max(8, _round_up(min(node_tile, _round_up(n_e, 8)), 8))
    n_e_pad = _round_up(n_e, nt)
    num_node_blocks = n_e_pad // nt
    e_pad = _round_up(max(n_edges, 1), edge_tile)
    num_edge_tiles = e_pad // edge_tile
    n_r_p = _round_up(n_r, 8)
    dr_pad = _round_up(r_hidden + 1, 128)     # +1 for the ones (denominator) column

    # ---- wrapper-side layout plumbing (padding only) -----------------------
    pad_e = e_pad - n_edges
    h_row = jnp.pad(edge_index_h.astype(jnp.int32), (0, pad_e),
                    constant_values=n_e_pad).reshape(1, e_pad)
    t_row = jnp.pad(edge_index_t.astype(jnp.int32), (0, pad_e),
                    constant_values=n_e_pad).reshape(1, e_pad)
    r_flat = jnp.pad(rel.astype(jnp.int32), (0, pad_e), constant_values=n_r_p)
    r_row = r_flat.reshape(1, e_pad)
    r_col = r_flat.reshape(e_pad, 1)

    x_e_p = jnp.pad(x_e.astype(f32), ((0, n_e_pad - n_e), (0, 0)))
    xr_aug = jnp.zeros((n_r_p, dr_pad), f32)
    xr_aug = xr_aug.at[:n_r, :r_hidden].set(x_r.astype(f32))
    xr_aug = xr_aug.at[:, r_hidden].set(1.0)                         # ones column
    w_ht = jnp.concatenate([w_h, w_t], axis=0).astype(f32)           # [2, De]
    w_r_p = jnp.pad(w_r.astype(f32), ((0, 0), (0, dr_pad - r_hidden)))  # [1, Dp]

    kernel = _make_kernel(nt, edge_tile, n_r_p, r_hidden, dr_pad)

    def full(shape):
        return pl.BlockSpec(shape, lambda i, j: (0,) * len(shape))

    grid_spec = pltpu.PrefetchScalarGridSpec(
        num_scalar_prefetch=0,
        grid=(num_node_blocks, num_edge_tiles),
        in_specs=[
            pl.BlockSpec((1, edge_tile), lambda i, j: (0, j)),   # head indices
            pl.BlockSpec((1, edge_tile), lambda i, j: (0, j)),   # tail indices
            pl.BlockSpec((1, edge_tile), lambda i, j: (0, j)),   # rel (row layout)
            pl.BlockSpec((edge_tile, 1), lambda i, j: (j, 0)),   # rel (col layout)
            pl.BlockSpec((nt, e_hidden), lambda i, j: (i, 0)),   # x_e node block
            full((n_r_p, dr_pad)),                               # x_r | ones | pad
            full((2, e_hidden)),                                 # [w_h; w_t]
            full((1, dr_pad)),                                   # w_r (padded)
        ],
        out_specs=pl.BlockSpec((nt, 2 * dr_pad), lambda i, j: (i, 0)),
        scratch_shapes=[
            pltpu.VMEM((2, nt), f32),          # s_h / s_t rows (this node block)
            pltpu.VMEM((1, n_r_p), f32),       # s_r row
            pltpu.VMEM((nt, 2), f32),          # running max (head | tail)
            pltpu.VMEM((nt, dr_pad), f32),     # accumulator head (+ l column)
            pltpu.VMEM((nt, dr_pad), f32),     # accumulator tail (+ l column)
        ],
    )

    # ---- VMEM limit from the actual resident footprint (v7x = 64 MiB phys) -
    bpe = 4
    vmem_est = bpe * (
        2 * nt * e_hidden                       # x_e block (double buffered)
        + 2 * n_r_p * dr_pad                    # x_r augmented
        + 2 * nt * 2 * dr_pad                   # output block
        + 2 * 4 * 8 * edge_tile                 # index tiles
        + 2 * nt + n_r_p + nt * 128             # small scratch (lane-padded)
        + 2 * nt * dr_pad                       # accumulators
        + 10 * nt * edge_tile                   # in-flight masks / temporaries
        + 3 * n_r_p * edge_tile
        + edge_tile * dr_pad
    )
    try:
        vmem_cap = int(pltpu.get_tpu_info().vmem_capacity_bytes)
    except Exception:
        vmem_cap = 64 * 1024 * 1024
    vmem_limit = int(min(0.9 * vmem_cap, max(32 * 1024 * 1024, 2 * vmem_est)))

    steps = num_node_blocks * num_edge_tiles
    flops = steps * (
        2 * 2 * nt * edge_tile * dr_pad         # two accumulation matmuls
        + 2 * 2 * nt * edge_tile                # e_h / e_t score gathers
        + 2 * n_r_p * edge_tile                 # e_r score gather
        + 2 * edge_tile * n_r_p * dr_pad        # x_r row gather
        + 2 * 2 * nt * edge_tile                # running-max gathers
    ) + num_node_blocks * 2 * (2 * nt * e_hidden + n_r_p * dr_pad)
    transcendentals = steps * 2 * (edge_tile + nt)
    bytes_accessed = bpe * (
        x_e_p.size + xr_aug.size + w_ht.size + w_r_p.size
        + 4 * e_pad * num_node_blocks + n_e_pad * 2 * dr_pad)

    out_full = pl.pallas_call(
        kernel,
        out_shape=jax.ShapeDtypeStruct((n_e_pad, 2 * dr_pad), f32),
        grid_spec=grid_spec,
        compiler_params=pltpu.CompilerParams(
            dimension_semantics=("parallel", "arbitrary"),
            vmem_limit_bytes=vmem_limit,
        ),
        cost_estimate=pl.CostEstimate(
            flops=int(flops),
            transcendentals=int(transcendentals),
            bytes_accessed=int(bytes_accessed),
        ),
    )(h_row, t_row, r_row, r_col, x_e_p, xr_aug, w_ht, w_r_p)

    # Slice off lane padding: head half | tail half.
    return jnp.concatenate(
        [out_full[:n_e, :r_hidden], out_full[:n_e, dr_pad:dr_pad + r_hidden]],
        axis=1)


def reference(x_e, x_r, w_h, w_t, w_r, h_idx, t_idx, rel):
    """Pure-JAX reference mirroring the PyTorch module semantics."""
    n_e = x_e.shape[0]
    s_h = (x_e @ w_h.T)[:, 0]
    s_t = (x_e @ w_t.T)[:, 0]
    s_r = (x_r @ w_r.T)[:, 0]
    e_h, e_t, e_r = s_h[h_idx], s_t[t_idx], s_r[rel]

    def seg_softmax(z, idx):
        z = jnp.where(z > 0, z, NEG_SLOPE * z)
        m = jax.ops.segment_max(z, idx, num_segments=n_e)
        ez = jnp.exp(z - m[idx])
        s = jax.ops.segment_sum(ez, idx, num_segments=n_e)
        return ez / (s[idx] + EPS)

    a_h = seg_softmax(e_h + e_r, h_idx)
    a_t = seg_softmax(e_t + e_r, t_idx)
    x_e_h = jax.ops.segment_sum(a_h[:, None] * x_r[rel], h_idx, num_segments=n_e)
    x_e_t = jax.ops.segment_sum(a_t[:, None] * x_r[rel], t_idx, num_segments=n_e)
    return jnp.concatenate([x_e_h, x_e_t], axis=1)


if __name__ == "__main__":
    key = jax.random.PRNGKey(0)
    # Small but non-trivial: E > edge_tile exercises the multi-tile online
    # softmax, node_tile=8 below exercises the node-block (scalable) path, and
    # N_E / N_R / E not multiples of 8 / 128 exercise all padding paths.
    N_E, N_R, E = 20, 12, 300
    E_HIDDEN, R_HIDDEN = 32, 32

    k = jax.random.split(key, 8)
    x_e = jax.random.normal(k[0], (N_E, E_HIDDEN), jnp.float32)
    x_r = jax.random.normal(k[1], (N_R, R_HIDDEN), jnp.float32)
    # nn.Linear(*, 1, bias=False) weights, shape [1, hidden]
    w_h = jax.random.normal(k[2], (1, E_HIDDEN), jnp.float32) * 0.1
    w_t = jax.random.normal(k[3], (1, E_HIDDEN), jnp.float32) * 0.1
    w_r = jax.random.normal(k[4], (1, R_HIDDEN), jnp.float32) * 0.1
    edge_index_h = jax.random.randint(k[5], (E,), 0, N_E)
    edge_index_t = jax.random.randint(k[6], (E,), 0, N_E)
    rel = jax.random.randint(k[7], (E,), 0, N_R)

    ref = reference(x_e, x_r, w_h, w_t, w_r, edge_index_h, edge_index_t, rel)

    # Default config: single node block, 2 edge tiles.
    out1 = gat_r_to_e(x_e, x_r, w_h, w_t, w_r, edge_index_h, edge_index_t, rel)
    out1 = jax.block_until_ready(out1)
    # Forced multi-node-block + multi-edge-tile config (scalable path).
    out2 = gat_r_to_e(x_e, x_r, w_h, w_t, w_r, edge_index_h, edge_index_t, rel,
                      node_tile=8, edge_tile=128)
    out2 = jax.block_until_ready(out2)

    assert out1.shape == (N_E, 2 * R_HIDDEN)
    assert out2.shape == (N_E, 2 * R_HIDDEN)
    assert jnp.allclose(out1, ref, atol=1e-4, rtol=1e-4), "mismatch (default tiling)"
    assert jnp.allclose(out2, ref, atol=1e-4, rtol=1e-4), "mismatch (node-blocked tiling)"
    print("KERNEL_OK")
</pallas_src>

<mosaic_0001>
module attributes {stable_mosaic.version = 11 : i64} {
  func.func @kernel(%arg0: i32, %arg1: i32, %arg2: memref<1x256xi32, #tpu.memory_space<vmem>>, %arg3: memref<1x256xi32, #tpu.memory_space<vmem>>, %arg4: memref<1x256xi32, #tpu.memory_space<vmem>>, %arg5: memref<256x1xi32, #tpu.memory_space<vmem>>, %arg6: memref<24x32xf32, #tpu.memory_space<vmem>>, %arg7: memref<16x128xf32, #tpu.memory_space<vmem>>, %arg8: memref<2x32xf32, #tpu.memory_space<vmem>>, %arg9: memref<1x128xf32, #tpu.memory_space<vmem>>, %arg10: memref<24x256xf32, #tpu.memory_space<vmem>>, %arg11: memref<2x24xf32, #tpu.memory_space<vmem>>, %arg12: memref<1x16xf32, #tpu.memory_space<vmem>>, %arg13: memref<24x2xf32, #tpu.memory_space<vmem>>, %arg14: memref<24x128xf32, #tpu.memory_space<vmem>>, %arg15: memref<24x128xf32, #tpu.memory_space<vmem>>) attributes {dimension_semantics = [#tpu.dimension_semantics<parallel>, #tpu.dimension_semantics<arbitrary>], iteration_bounds = array<i64: 1, 2>, scalar_prefetch = 0 : i64, scratch_operands = 5 : i64, tpu.core_type = #tpu.core_type<tc>, window_params = [{transform_indices = @transform_0, window_bounds = array<i64: 1, 256>}, {transform_indices = @transform_1, window_bounds = array<i64: 1, 256>}, {transform_indices = @transform_2, window_bounds = array<i64: 1, 256>}, {transform_indices = @transform_3, window_bounds = array<i64: 256, 1>}, {transform_indices = @transform_4, window_bounds = array<i64: 24, 32>}, {pipeline_mode = #tpu.pipeline_mode<synchronous>, transform_indices = @transform_5, window_bounds = array<i64: 16, 128>}, {pipeline_mode = #tpu.pipeline_mode<synchronous>, transform_indices = @transform_6, window_bounds = array<i64: 2, 32>}, {pipeline_mode = #tpu.pipeline_mode<synchronous>, transform_indices = @transform_7, window_bounds = array<i64: 1, 128>}, {transform_indices = @transform_8, window_bounds = array<i64: 24, 256>}]} {
    %c0_i32 = arith.constant 0 : i32
    %0 = arith.cmpi eq, %arg1, %c0_i32 : i32
    %1 = arith.extui %0 : i1 to i32
    %c0_i32_0 = arith.constant 0 : i32
    %2 = arith.cmpi ne, %1, %c0_i32_0 : i32
    scf.if %2 {
      %c0_46 = arith.constant 0 : index
      %c0_47 = arith.constant 0 : index
      %108 = vector.load %arg8[%c0_46, %c0_47] : memref<2x32xf32, #tpu.memory_space<vmem>>, vector<2x32xf32>
      %c0_48 = arith.constant 0 : index
      %c0_49 = arith.constant 0 : index
      %109 = vector.load %arg6[%c0_48, %c0_49] : memref<24x32xf32, #tpu.memory_space<vmem>>, vector<24x32xf32>
      %cst_50 = arith.constant dense<0.000000e+00> : vector<2x24xf32>
      %110 = tpu.matmul %108, %109, %cst_50 {dimension_numbers = #tpu.dot_dimension_numbers<[1], [1], [0], [0], [0, 0, 1, 0], [], []>} : vector<2x32xf32>, vector<24x32xf32>, vector<2x24xf32> -> vector<2x24xf32>
      %c0_51 = arith.constant 0 : index
      %c0_52 = arith.constant 0 : index
      %111 = vector.load %arg11[%c0_51, %c0_52] : memref<2x24xf32, #tpu.memory_space<vmem>>, vector<2x24xf32>
      tpu.vector_store %arg11[%c0_51, %c0_52], %110 {strides = array<i32>} : memref<2x24xf32, #tpu.memory_space<vmem>>, vector<2x24xf32>,
      %c0_53 = arith.constant 0 : index
      %c0_54 = arith.constant 0 : index
      %112 = vector.load %arg9[%c0_53, %c0_54] : memref<1x128xf32, #tpu.memory_space<vmem>>, vector<1x128xf32>
      %c0_55 = arith.constant 0 : index
      %c0_56 = arith.constant 0 : index
      %113 = vector.load %arg7[%c0_55, %c0_56] : memref<16x128xf32, #tpu.memory_space<vmem>>, vector<16x128xf32>
      %cst_57 = arith.constant dense<0.000000e+00> : vector<1x16xf32>
      %114 = tpu.matmul %112, %113, %cst_57 {dimension_numbers = #tpu.dot_dimension_numbers<[1], [1], [0], [0], [0, 0, 1, 0], [], []>} : vector<1x128xf32>, vector<16x128xf32>, vector<1x16xf32> -> vector<1x16xf32>
      %c0_58 = arith.constant 0 : index
      %c0_59 = arith.constant 0 : index
      %115 = vector.load %arg12[%c0_58, %c0_59] : memref<1x16xf32, #tpu.memory_space<vmem>>, vector<1x16xf32>
      tpu.vector_store %arg12[%c0_58, %c0_59], %114 {strides = array<i32>} : memref<1x16xf32, #tpu.memory_space<vmem>>, vector<1x16xf32>,
      %cst_60 = arith.constant -1.000000e+30 : f32
      %116 = vector.broadcast %cst_60 : f32 to vector<24x2xf32>
      %c0_61 = arith.constant 0 : index
      %c0_62 = arith.constant 0 : index
      %117 = vector.load %arg13[%c0_61, %c0_62] : memref<24x2xf32, #tpu.memory_space<vmem>>, vector<24x2xf32>
      tpu.vector_store %arg13[%c0_61, %c0_62], %116 {strides = array<i32>} : memref<24x2xf32, #tpu.memory_space<vmem>>, vector<24x2xf32>,
      %cst_63 = arith.constant 0.000000e+00 : f32
      %118 = vector.broadcast %cst_63 : f32 to vector<24x128xf32>
      %c0_64 = arith.constant 0 : index
      %c0_65 = arith.constant 0 : index
      %119 = vector.load %arg14[%c0_64, %c0_65] : memref<24x128xf32, #tpu.memory_space<vmem>>, vector<24x128xf32>
      tpu.vector_store %arg14[%c0_64, %c0_65], %118 {strides = array<i32>} : memref<24x128xf32, #tpu.memory_space<vmem>>, vector<24x128xf32>,
      %cst_66 = arith.constant 0.000000e+00 : f32
      %120 = vector.broadcast %cst_66 : f32 to vector<24x128xf32>
      %c0_67 = arith.constant 0 : index
      %c0_68 = arith.constant 0 : index
      %121 = vector.load %arg15[%c0_67, %c0_68] : memref<24x128xf32, #tpu.memory_space<vmem>>, vector<24x128xf32>
      tpu.vector_store %arg15[%c0_67, %c0_68], %120 {strides = array<i32>} : memref<24x128xf32, #tpu.memory_space<vmem>>, vector<24x128xf32>,
    } else {
    }
    %c24_i32 = arith.constant 24 : i32
    %3 = arith.muli %arg0, %c24_i32 : i32
    %c0 = arith.constant 0 : index
    %c0_1 = arith.constant 0 : index
    %4 = vector.load %arg2[%c0, %c0_1] : memref<1x256xi32, #tpu.memory_space<vmem>>, vector<1x256xi32>
    %5 = vector.broadcast %3 : i32 to vector<1x256xi32>
    %6 = arith.subi %4, %5 : vector<1x256xi32>
    %c0_2 = arith.constant 0 : index
    %c0_3 = arith.constant 0 : index
    %7 = vector.load %arg3[%c0_2, %c0_3] : memref<1x256xi32, #tpu.memory_space<vmem>>, vector<1x256xi32>
    %8 = vector.broadcast %3 : i32 to vector<1x256xi32>
    %9 = arith.subi %7, %8 : vector<1x256xi32>
    %c0_4 = arith.constant 0 : index
    %c0_5 = arith.constant 0 : index
    %10 = vector.load %arg4[%c0_4, %c0_5] : memref<1x256xi32, #tpu.memory_space<vmem>>, vector<1x256xi32>
    %c0_6 = arith.constant 0 : index
    %c0_7 = arith.constant 0 : index
    %11 = vector.load %arg5[%c0_6, %c0_7] : memref<256x1xi32, #tpu.memory_space<vmem>>, vector<256x1xi32>
    %12 = tpu.iota {dimensions = array<i32: 0>} : vector<24x256xi32>
    %13 = tpu.iota {dimensions = array<i32: 0>} : vector<16x256xi32>
    %14 = tpu.iota {dimensions = array<i32: 1>} : vector<256x16xi32>
    %15 = vector.broadcast %6 : vector<1x256xi32> to vector<24x256xi32>
    %16 = arith.cmpi eq, %12, %15 : vector<24x256xi32>
    %17 = vector.broadcast %9 : vector<1x256xi32> to vector<24x256xi32>
    %18 = arith.cmpi eq, %12, %17 : vector<24x256xi32>
    %19 = arith.extui %16 : vector<24x256xi1> to vector<24x256xi32>
    %20 = arith.sitofp %19 : vector<24x256xi32> to vector<24x256xf32>
    %21 = arith.extui %18 : vector<24x256xi1> to vector<24x256xi32>
    %22 = arith.sitofp %21 : vector<24x256xi32> to vector<24x256xf32>
    %23 = vector.broadcast %10 : vector<1x256xi32> to vector<16x256xi32>
    %24 = arith.cmpi eq, %13, %23 : vector<16x256xi32>
    %25 = arith.extui %24 : vector<16x256xi1> to vector<16x256xi32>
    %26 = arith.sitofp %25 : vector<16x256xi32> to vector<16x256xf32>
    %27 = vector.broadcast %11 : vector<256x1xi32> to vector<256x16xi32>
    %28 = arith.cmpi eq, %14, %27 : vector<256x16xi32>
    %29 = arith.extui %28 : vector<256x16xi1> to vector<256x16xi32>
    %30 = arith.sitofp %29 : vector<256x16xi32> to vector<256x16xf32>
    %c0_8 = arith.constant 0 : index
    %c0_9 = arith.constant 0 : index
    %31 = vector.load %arg11[%c0_8, %c0_9] : memref<2x24xf32, #tpu.memory_space<vmem>>, vector<1x24xf32>
    %cst = arith.constant dense<0.000000e+00> : vector<1x256xf32>
    %32 = tpu.matmul %31, %20, %cst {dimension_numbers = #tpu.dot_dimension_numbers<[1], [0], [0], [1], [0, 0, 1, 1], [], []>} : vector<1x24xf32>, vector<24x256xf32>, vector<1x256xf32> -> vector<1x256xf32>
    %c1 = arith.constant 1 : index
    %c0_10 = arith.constant 0 : index
    %33 = vector.load %arg11[%c1, %c0_10] : memref<2x24xf32, #tpu.memory_space<vmem>>, vector<1x24xf32>
    %cst_11 = arith.constant dense<0.000000e+00> : vector<1x256xf32>
    %34 = tpu.matmul %33, %22, %cst_11 {dimension_numbers = #tpu.dot_dimension_numbers<[1], [0], [0], [1], [0, 0, 1, 1], [], []>} : vector<1x24xf32>, vector<24x256xf32>, vector<1x256xf32> -> vector<1x256xf32>
    %c0_12 = arith.constant 0 : index
    %c0_13 = arith.constant 0 : index
    %35 = vector.load %arg12[%c0_12, %c0_13] : memref<1x16xf32, #tpu.memory_space<vmem>>, vector<1x16xf32>
    %cst_14 = arith.constant dense<0.000000e+00> : vector<1x256xf32>
    %36 = tpu.matmul %35, %26, %cst_14 {dimension_numbers = #tpu.dot_dimension_numbers<[1], [0], [0], [1], [0, 0, 1, 1], [], []>} : vector<1x16xf32>, vector<16x256xf32>, vector<1x256xf32> -> vector<1x256xf32>
    %37 = arith.addf %32, %36 : vector<1x256xf32>
    %cst_15 = arith.constant 0.000000e+00 : f32
    %38 = vector.broadcast %cst_15 : f32 to vector<1x256xf32>
    %39 = arith.cmpf ogt, %37, %38 : vector<1x256xf32>
    %cst_16 = arith.constant 0.00999999977 : f32
    %40 = vector.broadcast %cst_16 : f32 to vector<1x256xf32>
    %41 = arith.mulf %40, %37 : vector<1x256xf32>
    %42 = arith.select %39, %37, %41 : vector<1x256xi1>, vector<1x256xf32>
    %43 = arith.addf %34, %36 : vector<1x256xf32>
    %cst_17 = arith.constant 0.000000e+00 : f32
    %44 = vector.broadcast %cst_17 : f32 to vector<1x256xf32>
    %45 = arith.cmpf ogt, %43, %44 : vector<1x256xf32>
    %cst_18 = arith.constant 0.00999999977 : f32
    %46 = vector.broadcast %cst_18 : f32 to vector<1x256xf32>
    %47 = arith.mulf %46, %43 : vector<1x256xf32>
    %48 = arith.select %45, %43, %47 : vector<1x256xi1>, vector<1x256xf32>
    %c0_19 = arith.constant 0 : index
    %c0_20 = arith.constant 0 : index
    %49 = vector.load %arg7[%c0_19, %c0_20] : memref<16x128xf32, #tpu.memory_space<vmem>>, vector<16x128xf32>
    %cst_21 = arith.constant dense<0.000000e+00> : vector<256x128xf32>
    %50 = tpu.matmul %30, %49, %cst_21 {dimension_numbers = #tpu.dot_dimension_numbers<[1], [0], [0], [1], [0, 0, 1, 1], [], []>} : vector<256x16xf32>, vector<16x128xf32>, vector<256x128xf32> -> vector<256x128xf32>
    %cst_22 = arith.constant 1.000000e+00 : f32
    %51 = vector.broadcast %cst_22 : f32 to vector<1x24xf32>
    %c0_23 = arith.constant 0 : index
    %c0_24 = arith.constant 0 : index
    %52 = vector.load %arg13[%c0_23, %c0_24] : memref<24x2xf32, #tpu.memory_space<vmem>>, vector<24x2xf32>
    %53 = vector.extract_strided_slice %52 {offsets = [0, 0], sizes = [24, 1], strides = [1, 1]} : vector<24x2xf32> to vector<24x1xf32>
    %cst_25 = arith.constant -1.000000e+30 : f32
    %54 = vector.shape_cast %42 : vector<1x256xf32> to vector<1x256xf32>
    %55 = vector.broadcast %54 : vector<1x256xf32> to vector<24x256xf32>
    %56 = vector.broadcast %cst_25 : f32 to vector<24x256xf32>
    %57 = arith.select %16, %55, %56 : vector<24x256xi1>, vector<24x256xf32>
    %cst_26 = arith.constant dense<0xFF800000> : vector<24xf32>
    %58 = vector.multi_reduction <maximumf>, %57, %cst_26 [1] : vector<24x256xf32> to vector<24xf32>
    %59 = vector.shape_cast %58 : vector<24xf32> to vector<24x1xf32>
    %60 = arith.maximumf %53, %59 : vector<24x1xf32>
    %61 = arith.subf %53, %60 : vector<24x1xf32>
    %62 = math.exp %61 : vector<24x1xf32>
    %63 = vector.broadcast %60 : vector<24x1xf32> to vector<24x256xf32>
    %64 = arith.mulf %20, %63 : vector<24x256xf32>
    %cst_27 = arith.constant dense<0.000000e+00> : vector<1x256xf32>
    %65 = tpu.matmul %51, %64, %cst_27 {dimension_numbers = #tpu.dot_dimension_numbers<[1], [0], [0], [1], [0, 0, 1, 1], [], []>} : vector<1x24xf32>, vector<24x256xf32>, vector<1x256xf32> -> vector<1x256xf32>
    %66 = arith.subf %42, %65 : vector<1x256xf32>
    %67 = math.exp %66 : vector<1x256xf32>
    %cst_28 = arith.constant 0.000000e+00 : f32
    %68 = vector.shape_cast %67 : vector<1x256xf32> to vector<1x256xf32>
    %69 = vector.broadcast %68 : vector<1x256xf32> to vector<24x256xf32>
    %70 = vector.broadcast %cst_28 : f32 to vector<24x256xf32>
    %71 = arith.select %16, %69, %70 : vector<24x256xi1>, vector<24x256xf32>
    %72 = vector.extract_strided_slice %52 {offsets = [0, 1], sizes = [24, 1], strides = [1, 1]} : vector<24x2xf32> to vector<24x1xf32>
    %cst_29 = arith.constant -1.000000e+30 : f32
    %73 = vector.shape_cast %48 : vector<1x256xf32> to vector<1x256xf32>
    %74 = vector.broadcast %73 : vector<1x256xf32> to vector<24x256xf32>
    %75 = vector.broadcast %cst_29 : f32 to vector<24x256xf32>
    %76 = arith.select %18, %74, %75 : vector<24x256xi1>, vector<24x256xf32>
    %cst_30 = arith.constant dense<0xFF800000> : vector<24xf32>
    %77 = vector.multi_reduction <maximumf>, %76, %cst_30 [1] : vector<24x256xf32> to vector<24xf32>
    %78 = vector.shape_cast %77 : vector<24xf32> to vector<24x1xf32>
    %79 = arith.maximumf %72, %78 : vector<24x1xf32>
    %80 = arith.subf %72, %79 : vector<24x1xf32>
    %81 = math.exp %80 : vector<24x1xf32>
    %82 = vector.broadcast %79 : vector<24x1xf32> to vector<24x256xf32>
    %83 = arith.mulf %22, %82 : vector<24x256xf32>
    %cst_31 = arith.constant dense<0.000000e+00> : vector<1x256xf32>
    %84 = tpu.matmul %51, %83, %cst_31 {dimension_numbers = #tpu.dot_dimension_numbers<[1], [0], [0], [1], [0, 0, 1, 1], [], []>} : vector<1x24xf32>, vector<24x256xf32>, vector<1x256xf32> -> vector<1x256xf32>
    %85 = arith.subf %48, %84 : vector<1x256xf32>
    %86 = math.exp %85 : vector<1x256xf32>
    %cst_32 = arith.constant 0.000000e+00 : f32
    %87 = vector.shape_cast %86 : vector<1x256xf32> to vector<1x256xf32>
    %88 = vector.broadcast %87 : vector<1x256xf32> to vector<24x256xf32>
    %89 = vector.broadcast %cst_32 : f32 to vector<24x256xf32>
    %90 = arith.select %18, %88, %89 : vector<24x256xi1>, vector<24x256xf32>
    %c0_33 = arith.constant 0 : index
    %c0_34 = arith.constant 0 : index
    %91 = vector.load %arg14[%c0_33, %c0_34] : memref<24x128xf32, #tpu.memory_space<vmem>>, vector<24x128xf32>
    %92 = vector.broadcast %62 : vector<24x1xf32> to vector<24x128xf32>
    %93 = arith.mulf %92, %91 : vector<24x128xf32>
    %cst_35 = arith.constant dense<0.000000e+00> : vector<24x128xf32>
    %94 = tpu.matmul %71, %50, %cst_35 {dimension_numbers = #tpu.dot_dimension_numbers<[1], [0], [0], [1], [0, 0, 1, 1], [], []>} : vector<24x256xf32>, vector<256x128xf32>, vector<24x128xf32> -> vector<24x128xf32>
    %95 = arith.addf %93, %94 : vector<24x128xf32>
    %c0_36 = arith.constant 0 : index
    %c0_37 = arith.constant 0 : index
    %96 = vector.load %arg14[%c0_36, %c0_37] : memref<24x128xf32, #tpu.memory_space<vmem>>, vector<24x128xf32>
    tpu.vector_store %arg14[%c0_36, %c0_37], %95 {strides = array<i32>} : memref<24x128xf32, #tpu.memory_space<vmem>>, vector<24x128xf32>,
    %c0_38 = arith.constant 0 : index
    %c0_39 = arith.constant 0 : index
    %97 = vector.load %arg15[%c0_38, %c0_39] : memref<24x128xf32, #tpu.memory_space<vmem>>, vector<24x128xf32>
    %98 = vector.broadcast %81 : vector<24x1xf32> to vector<24x128xf32>
    %99 = arith.mulf %98, %97 : vector<24x128xf32>
    %cst_40 = arith.constant dense<0.000000e+00> : vector<24x128xf32>
    %100 = tpu.matmul %90, %50, %cst_40 {dimension_numbers = #tpu.dot_dimension_numbers<[1], [0], [0], [1], [0, 0, 1, 1], [], []>} : vector<24x256xf32>, vector<256x128xf32>, vector<24x128xf32> -> vector<24x128xf32>
    %101 = arith.addf %99, %100 : vector<24x128xf32>
    %c0_41 = arith.constant 0 : index
    %c0_42 = arith.constant 0 : index
    %102 = vector.load %arg15[%c0_41, %c0_42] : memref<24x128xf32, #tpu.memory_space<vmem>>, vector<24x128xf32>
    tpu.vector_store %arg15[%c0_41, %c0_42], %101 {strides = array<i32>} : memref<24x128xf32, #tpu.memory_space<vmem>>, vector<24x128xf32>,
    %103 = tpu.concatenate %60, %79 in 1 : vector<24x1xf32>, vector<24x1xf32> -> vector<24x2xf32>
    %c0_43 = arith.constant 0 : index
    %c0_44 = arith.constant 0 : index
    %104 = vector.load %arg13[%c0_43, %c0_44] : memref<24x2xf32, #tpu.memory_space<vmem>>, vector<24x2xf32>
    tpu.vector_store %arg13[%c0_43, %c0_44], %103 {strides = array<i32>} : memref<24x2xf32, #tpu.memory_space<vmem>>, vector<24x2xf32>,
    %c1_i32 = arith.constant 1 : i32
    %105 = arith.cmpi eq, %arg1, %c1_i32 : i32
    %106 = arith.extui %105 : i1 to i32
    %c0_i32_45 = arith.constant 0 : i32
    %107 = arith.cmpi ne, %106, %c0_i32_45 : i32
    scf.if %107 {
      %c0_46 = arith.constant 0 : index
      %c0_47 = arith.constant 0 : index
      %108 = vector.load %arg14[%c0_46, %c0_47] : memref<24x128xf32, #tpu.memory_space<vmem>>, vector<24x128xf32>
      %c0_48 = arith.constant 0 : index
      %c0_49 = arith.constant 0 : index
      %109 = vector.load %arg15[%c0_48, %c0_49] : memref<24x128xf32, #tpu.memory_space<vmem>>, vector<24x128xf32>
      %110 = vector.extract_strided_slice %108 {offsets = [0, 32], sizes = [24, 1], strides = [1, 1]} : vector<24x128xf32> to vector<24x1xf32>
      %cst_50 = arith.constant 1.000000e-16 : f32
      %111 = vector.broadcast %cst_50 : f32 to vector<24x1xf32>
      %112 = arith.addf %110, %111 : vector<24x1xf32>
      %113 = tpu.reciprocal %112 : vector<24x1xf32> -> vector<24x1xf32>
      %114 = vector.extract_strided_slice %109 {offsets = [0, 32], sizes = [24, 1], strides = [1, 1]} : vector<24x128xf32> to vector<24x1xf32>
      %cst_51 = arith.constant 1.000000e-16 : f32
      %115 = vector.broadcast %cst_51 : f32 to vector<24x1xf32>
      %116 = arith.addf %114, %115 : vector<24x1xf32>
      %117 = tpu.reciprocal %116 : vector<24x1xf32> -> vector<24x1xf32>
      %118 = vector.broadcast %113 : vector<24x1xf32> to vector<24x128xf32>
      %119 = arith.mulf %108, %118 : vector<24x128xf32>
      %c0_52 = arith.constant 0 : index
      %c0_53 = arith.constant 0 : index
      %120 = vector.load %arg10[%c0_52, %c0_53] : memref<24x256xf32, #tpu.memory_space<vmem>>, vector<24x128xf32>
      tpu.vector_store %arg10[%c0_52, %c0_53], %119 {strides = array<i32>} : memref<24x256xf32, #tpu.memory_space<vmem>>, vector<24x128xf32>,
      %121 = vector.broadcast %117 : vector<24x1xf32> to vector<24x128xf32>
      %122 = arith.mulf %109, %121 : vector<24x128xf32>
      %c0_54 = arith.constant 0 : index
      %c128 = arith.constant 128 : index
      %123 = vector.load %arg10[%c0_54, %c128] : memref<24x256xf32, #tpu.memory_space<vmem>>, vector<24x128xf32>
      tpu.vector_store %arg10[%c0_54, %c128], %122 {strides = array<i32>} : memref<24x256xf32, #tpu.memory_space<vmem>>, vector<24x128xf32>,
    } else {
    }
    return
  }
  func.func @transform_0(%arg0: i32, %arg1: i32) -> (i32, i32) {
    %c0_i32 = arith.constant 0 : i32
    %c0_i32_0 = arith.constant 0 : i32
    return %c0_i32, %arg1 : i32, i32
  }
  func.func @transform_1(%arg0: i32, %arg1: i32) -> (i32, i32) {
    %c0_i32 = arith.constant 0 : i32
    %c0_i32_0 = arith.constant 0 : i32
    return %c0_i32, %arg1 : i32, i32
  }
  func.func @transform_2(%arg0: i32, %arg1: i32) -> (i32, i32) {
    %c0_i32 = arith.constant 0 : i32
    %c0_i32_0 = arith.constant 0 : i32
    return %c0_i32, %arg1 : i32, i32
  }
  func.func @transform_3(%arg0: i32, %arg1: i32) -> (i32, i32) {
    %c0_i32 = arith.constant 0 : i32
    %c0_i32_0 = arith.constant 0 : i32
    return %arg1, %c0_i32 : i32, i32
  }
  func.func @transform_4(%arg0: i32, %arg1: i32) -> (i32, i32) {
    %c0_i32 = arith.constant 0 : i32
    %c0_i32_0 = arith.constant 0 : i32
    return %arg0, %c0_i32 : i32, i32
  }
  func.func @transform_5(%arg0: i32, %arg1: i32) -> (i32, i32) {
    %c0_i32 = arith.constant 0 : i32
    %c0_i32_0 = arith.constant 0 : i32
    %c0_i32_1 = arith.constant 0 : i32
    return %c0_i32, %c0_i32_0 : i32, i32
  }
  func.func @transform_6(%arg0: i32, %arg1: i32) -> (i32, i32) {
    %c0_i32 = arith.constant 0 : i32
    %c0_i32_0 = arith.constant 0 : i32
    %c0_i32_1 = arith.constant 0 : i32
    return %c0_i32, %c0_i32_0 : i32, i32
  }
  func.func @transform_7(%arg0: i32, %arg1: i32) -> (i32, i32) {
    %c0_i32 = arith.constant 0 : i32
    %c0_i32_0 = arith.constant 0 : i32
    %c0_i32_1 = arith.constant 0 : i32
    return %c0_i32, %c0_i32_0 : i32, i32
  }
  func.func @transform_8(%arg0: i32, %arg1: i32) -> (i32, i32) {
    %c0_i32 = arith.constant 0 : i32
    %c0_i32_0 = arith.constant 0 : i32
    return %arg0, %c0_i32 : i32, i32
  }
}

</mosaic_0001>

<llo_original>
// kernel: tpu_custom_call.1
$region0: #{tpu_custom_call.1}
  #allocation0 [shape = 'u32[]', space=smem, size = 0x4, offset = 0x4, fixed_abs, tag = 'smem constant byte address 0x4 - core index']
  #allocation1 [shape = 'u32[72,128]{1,0:T(1,128)}', space=vmem, size = 0x9000, scoped, tag = 'internal scratch']
  #allocation2 [shape = 'f32[2,24]{1,0:T(2,128)}', space=vmem, size = 0x400, scoped, tag = 'scratch operand']
  #allocation3 [shape = 'f32[1,16]{1,0:T(1,128)}', space=vmem, size = 0x200, scoped, tag = 'scratch operand']
  #allocation4 [shape = 'f32[24,2]{1,0:T(8,128)}', space=vmem, size = 0x3000, scoped, tag = 'scratch operand']
  #allocation5 [shape = 'f32[24,128]{1,0:T(8,128)}', space=vmem, size = 0x3000, scoped, tag = 'scratch operand']
  #allocation6 [shape = 'f32[24,128]{1,0:T(8,128)}', space=vmem, size = 0x3000, scoped, tag = 'scratch operand']
  %s0 = inlined_call_operand.vmem [shape: s32[1,512], index: 0, kind: input, shape index: {}]
  %s1 = inlined_call_operand.vmem [shape: s32[1,512], index: 1, kind: input, shape index: {}]
  %s2 = inlined_call_operand.vmem [shape: s32[1,512], index: 2, kind: input, shape index: {}]
  %s3 = inlined_call_operand.vmem [shape: s32[512,1], index: 3, kind: input, shape index: {}]
  %s4 = inlined_call_operand.vmem [shape: f32[24,32], index: 4, kind: input, shape index: {}]
  %s5 = inlined_call_operand.vmem [shape: f32[16,128], index: 5, kind: input, shape index: {}]
  %s6 = inlined_call_operand.vmem [shape: f32[2,32], index: 6, kind: input, shape index: {}]
  %s7 = inlined_call_operand.vmem [shape: f32[1,128], index: 7, kind: input, shape index: {}]
  %s8 = inlined_call_operand.hbm [shape: f32[24,256], index: 8, kind: output, shape index: {}]
  %s9 = sld [smem:[#allocation0]]
  $region73: #{tpu_custom_call.1} parent=0
    _
  %s11 = ssub.s32 1, %s9
  %s12 = scalar_select 0, %s11, %s9
  $region1: #{tpu_custom_call.1} parent=0
    #allocation7 [shape = 'u8[24576]{0}', space=vmem, size = 0x6000, scoped, tag = 'output window, operand 0, single buffered']
    #allocation8 [shape = 's32[2]{0}', space=sflag, size = 0x8, scoped, tag = 'scoped memory for tpu_custom_call.1']
    %13 = vsyncpa [#allocation8], 0
    loop: start=0, step=1, limit=4
    $region2: #{tpu_custom_call.1} parent=1 // loop_pre_header
      _
    $region3: #{tpu_custom_call.1} parent=1 // loop_header
      %s15 = sphi 0, %s19
      %p16 = scmp.ge.s32.totalorder %s15, 4
      %s22 = sphi 0, %s34
      %s23 = sphi 0, %s30
      %s24 = sphi 0, %s22
      %s25 = sphi 0, %s23
      %s26 = sphi 0, %s24
      %s27 = sphi 0, %s25
      %s37 = sphi 0, %s39
      %s40 = sphi 0, %s37
      %s41 = sphi 0, %s40
      %s57 = sphi 0, %s41
      %s63 = sphi 0, %s65
      %s66 = sphi 0, %s63
      %s67 = sphi 0, %s66
      %s83 = sphi 0, %s67
      %s89 = sphi 0, %s91
      %s92 = sphi 0, %s89
      %s93 = sphi 0, %s92
      %s109 = sphi 0, %s93
      %s115 = sphi 0, %s117
      %s118 = sphi 0, %s115
      %s119 = sphi 0, %s118
      %s135 = sphi 0, %s119
      %s141 = sphi 0, %s143
      %s144 = sphi 0, %s141
      %s145 = sphi 0, %s144
      %s161 = sphi 0, %s145
      %s165 = sphi 0, %s165
      %s167 = sphi 0, %s165
      %s168 = sphi 0, %s167
      %s182 = sphi 0, %s168
      %s186 = sphi 0, %s186
      %s188 = sphi 0, %s186
      %s189 = sphi 0, %s188
      %s203 = sphi 0, %s189
      %s207 = sphi 0, %s207
      %s209 = sphi 0, %s207
      %s210 = sphi 0, %s209
      %s224 = sphi 0, %s210
      %s230 = sphi 0, %s232
      %s233 = sphi 0, %s230
      %s234 = sphi 0, %s233
      %s250 = sphi 0, %s234
    $region4: #{tpu_custom_call.1} parent=1 // loop_header_branch
      %18 = sbr.rel (%p16) target = $region8
    $region5: #{tpu_custom_call.1} parent=1 // loop_body
      %s20 = ssub.s32 %s15, 1
      %s21 = ssub.s32 %s15, 2
      %s28 = sadd.s32 1, %s23
      %p29 = scmp.ge.s32.totalorder %s28, 2
      %s30 = scalar_select %p29, 0, %s28
      %s31 = sadd.s32 1, %s22
      %s32 = scalar_select %p29, %s31, %s22
      %p33 = scmp.ge.s32.totalorder %s32, 1
      %s34 = scalar_select %p33, 0, %s32
      %s35 = ssub.s32 %s23, %s30
      %p36 = scmp.eq.s32.totalorder %s35, 0
      %s38 = sadd.s32 %s37, 1
      %s39 = scalar_select %p36, %s37, %s38
      %p42 = pneg %p36
      %p43 = scmp.eq.s32.totalorder %s15, 1
      %p44 = por %p42, %p43
      %p45 = scmp.ne.s32.totalorder %s37, %s40
      %p46 = scmp.eq.s32.totalorder %s15, 0
      %p47 = por %p45, %p46
      %p48 = scmp.ne.s32.totalorder %s37, %s40
      %p49 = scmp.eq.s32.totalorder %s20, 1
      %p50 = por %p48, %p49
      %p51 = scmp.ne.s32.totalorder %s40, %s41
      %p52 = scmp.eq.s32.totalorder %s20, 0
      %p53 = por %p51, %p52
      %p54 = scmp.ne.s32.totalorder %s40, %s41
      %p55 = scmp.eq.s32.totalorder %s21, 1
      %p56 = por %p54, %p55
      %p58 = scmp.ne.s32.totalorder %s41, %s57
      %p59 = scmp.eq.s32.totalorder %s21, 0
      %p60 = por %p58, %p59
      %s61 = ssub.s32 %s23, %s30
      %p62 = scmp.eq.s32.totalorder %s61, 0
      %s64 = sadd.s32 %s63, 1
      %s65 = scalar_select %p62, %s63, %s64
      %p68 = pneg %p62
      %p69 = scmp.eq.s32.totalorder %s15, 1
      %p70 = por %p68, %p69
      %p71 = scmp.ne.s32.totalorder %s63, %s66
      %p72 = scmp.eq.s32.totalorder %s15, 0
      %p73 = por %p71, %p72
      %p74 = scmp.ne.s32.totalorder %s63, %s66
      %p75 = scmp.eq.s32.totalorder %s20, 1
      %p76 = por %p74, %p75
      %p77 = scmp.ne.s32.totalorder %s66, %s67
      %p78 = scmp.eq.s32.totalorder %s20, 0
      %p79 = por %p77, %p78
      %p80 = scmp.ne.s32.totalorder %s66, %s67
      %p81 = scmp.eq.s32.totalorder %s21, 1
      %p82 = por %p80, %p81
      %p84 = scmp.ne.s32.totalorder %s67, %s83
      %p85 = scmp.eq.s32.totalorder %s21, 0
      %p86 = por %p84, %p85
      %s87 = ssub.s32 %s23, %s30
      %p88 = scmp.eq.s32.totalorder %s87, 0
      %s90 = sadd.s32 %s89, 1
      %s91 = scalar_select %p88, %s89, %s90
      %p94 = pneg %p88
      %p95 = scmp.eq.s32.totalorder %s15, 1
      %p96 = por %p94, %p95
      %p97 = scmp.ne.s32.totalorder %s89, %s92
      %p98 = scmp.eq.s32.totalorder %s15, 0
      %p99 = por %p97, %p98
      %p100 = scmp.ne.s32.totalorder %s89, %s92
      %p101 = scmp.eq.s32.totalorder %s20, 1
      %p102 = por %p100, %p101
      %p103 = scmp.ne.s32.totalorder %s92, %s93
      %p104 = scmp.eq.s32.totalorder %s20, 0
      %p105 = por %p103, %p104
      %p106 = scmp.ne.s32.totalorder %s92, %s93
      %p107 = scmp.eq.s32.totalorder %s21, 1
      %p108 = por %p106, %p107
      %p110 = scmp.ne.s32.totalorder %s93, %s109
      %p111 = scmp.eq.s32.totalorder %s21, 0
      %p112 = por %p110, %p111
      %s113 = ssub.s32 %s23, %s30
      %p114 = scmp.eq.s32.totalorder %s113, 0
      %s116 = sadd.s32 %s115, 1
      %s117 = scalar_select %p114, %s115, %s116
      %p120 = pneg %p114
      %p121 = scmp.eq.s32.totalorder %s15, 1
      %p122 = por %p120, %p121
      %p123 = scmp.ne.s32.totalorder %s115, %s118
      %p124 = scmp.eq.s32.totalorder %s15, 0
      %p125 = por %p123, %p124
      %p126 = scmp.ne.s32.totalorder %s115, %s118
      %p127 = scmp.eq.s32.totalorder %s20, 1
      %p128 = por %p126, %p127
      %p129 = scmp.ne.s32.totalorder %s118, %s119
      %p130 = scmp.eq.s32.totalorder %s20, 0
      %p131 = por %p129, %p130
      %p132 = scmp.ne.s32.totalorder %s118, %s119
      %p133 = scmp.eq.s32.totalorder %s21, 1
      %p134 = por %p132, %p133
      %p136 = scmp.ne.s32.totalorder %s119, %s135
      %p137 = scmp.eq.s32.totalorder %s21, 0
      %p138 = por %p136, %p137
      %s139 = ssub.s32 %s22, %s34
      %p140 = scmp.eq.s32.totalorder %s139, 0
      %s142 = sadd.s32 %s141, 1
      %s143 = scalar_select %p140, %s141, %s142
      %p146 = pneg %p140
      %p147 = scmp.eq.s32.totalorder %s15, 1
      %p148 = por %p146, %p147
      %p149 = scmp.ne.s32.totalorder %s141, %s144
      %p150 = scmp.eq.s32.totalorder %s15, 0
      %p151 = por %p149, %p150
      %p152 = scmp.ne.s32.totalorder %s141, %s144
      %p153 = scmp.eq.s32.totalorder %s20, 1
      %p154 = por %p152, %p153
      %p155 = scmp.ne.s32.totalorder %s144, %s145
      %p156 = scmp.eq.s32.totalorder %s20, 0
      %p157 = por %p155, %p156
      %p158 = scmp.ne.s32.totalorder %s144, %s145
      %p159 = scmp.eq.s32.totalorder %s21, 1
      %p160 = por %p158, %p159
      %p162 = scmp.ne.s32.totalorder %s145, %s161
      %p163 = scmp.eq.s32.totalorder %s21, 0
      %p164 = por %p162, %p163
      %s166 = sadd.s32 %s165, 1
      %p169 = scmp.eq.s32.totalorder %s15, 1
      %p170 = scmp.ne.s32.totalorder %s165, %s167
      %p171 = scmp.eq.s32.totalorder %s15, 0
      %p172 = por %p170, %p171
      %p173 = scmp.ne.s32.totalorder %s165, %s167
      %p174 = scmp.eq.s32.totalorder %s20, 1
      %p175 = por %p173, %p174
      %p176 = scmp.ne.s32.totalorder %s167, %s168
      %p177 = scmp.eq.s32.totalorder %s20, 0
      %p178 = por %p176, %p177
      %p179 = scmp.ne.s32.totalorder %s167, %s168
      %p180 = scmp.eq.s32.totalorder %s21, 1
      %p181 = por %p179, %p180
      %p183 = scmp.ne.s32.totalorder %s168, %s182
      %p184 = scmp.eq.s32.totalorder %s21, 0
      %p185 = por %p183, %p184
      %s187 = sadd.s32 %s186, 1
      %p190 = scmp.eq.s32.totalorder %s15, 1
      %p191 = scmp.ne.s32.totalorder %s186, %s188
      %p192 = scmp.eq.s32.totalorder %s15, 0
      %p193 = por %p191, %p192
      %p194 = scmp.ne.s32.totalorder %s186, %s188
      %p195 = scmp.eq.s32.totalorder %s20, 1
      %p196 = por %p194, %p195
      %p197 = scmp.ne.s32.totalorder %s188, %s189
      %p198 = scmp.eq.s32.totalorder %s20, 0
      %p199 = por %p197, %p198
      %p200 = scmp.ne.s32.totalorder %s188, %s189
      %p201 = scmp.eq.s32.totalorder %s21, 1
      %p202 = por %p200, %p201
      %p204 = scmp.ne.s32.totalorder %s189, %s203
      %p205 = scmp.eq.s32.totalorder %s21, 0
      %p206 = por %p204, %p205
      %s208 = sadd.s32 %s207, 1
      %p211 = scmp.eq.s32.totalorder %s15, 1
      %p212 = scmp.ne.s32.totalorder %s207, %s209
      %p213 = scmp.eq.s32.totalorder %s15, 0
      %p214 = por %p212, %p213
      %p215 = scmp.ne.s32.totalorder %s207, %s209
      %p216 = scmp.eq.s32.totalorder %s20, 1
      %p217 = por %p215, %p216
      %p218 = scmp.ne.s32.totalorder %s209, %s210
      %p219 = scmp.eq.s32.totalorder %s20, 0
      %p220 = por %p218, %p219
      %p221 = scmp.ne.s32.totalorder %s209, %s210
      %p222 = scmp.eq.s32.totalorder %s21, 1
      %p223 = por %p221, %p222
      %p225 = scmp.ne.s32.totalorder %s210, %s224
      %p226 = scmp.eq.s32.totalorder %s21, 0
      %p227 = por %p225, %p226
      %s228 = ssub.s32 %s22, %s34
      %p229 = scmp.eq.s32.totalorder %s228, 0
      %s231 = sadd.s32 %s230, 1
      %s232 = scalar_select %p229, %s230, %s231
      %p235 = pneg %p229
      %p236 = scmp.eq.s32.totalorder %s15, 1
      %p237 = por %p235, %p236
      %p238 = scmp.ne.s32.totalorder %s230, %s233
      %p239 = scmp.eq.s32.totalorder %s15, 0
      %p240 = por %p238, %p239
      %p241 = scmp.ne.s32.totalorder %s230, %s233
      %p242 = scmp.eq.s32.totalorder %s20, 1
      %p243 = por %p241, %p242
      %p244 = scmp.ne.s32.totalorder %s233, %s234
      %p245 = scmp.eq.s32.totalorder %s20, 0
      %p246 = por %p244, %p245
      %p247 = scmp.ne.s32.totalorder %s233, %s234
      %p248 = scmp.eq.s32.totalorder %s21, 1
      %p249 = por %p247, %p248
      %p251 = scmp.ne.s32.totalorder %s234, %s250
      %p252 = scmp.eq.s32.totalorder %s21, 0
      %p253 = por %p251, %p252
      %p254 = scmp.le.s32.totalorder 1, %s15
      %p255 = scmp.lt.s32.totalorder %s15, 3
      %p256 = pnand %p254, %p255
      %p257 = pneg %p256
      // Predicated region
      $region9: #{tpu_custom_call.1} parent=5 // pred_check
        _
      $region10: #{tpu_custom_call.1} parent=5 // pred_check_branch
        %259 = sbr.rel (%p256) target = $region12
      $region11: #{tpu_custom_call.1} parent=5 // pred_region
        %s260 = ssub.s32 %s15, 1
        // Predicated region
        $region13: #{tpu_custom_call.1} parent=11 // pred_check
          %p261 = pneg %p157
        $region14: #{tpu_custom_call.1} parent=11 // pred_check_branch
          %263 = sbr.rel (%p261) target = $region16
        $region15: #{tpu_custom_call.1} parent=11 // pred_region
          %s264 = smul.u32 3, %s24
          %p265 = scmp.lt.s32.totalorder %s264, 2
          %s266 = scalar_select %p265, %s264, 2
          %s267 = smul.addr %s266, 8
          %s268 = scalar_lea.vmem %s4, %s267
          %s269 = smul.u32 3, %s24
        $region16: #{tpu_custom_call.1} parent=11 // pred_fallthru
          _
        // Predicated region
        $region17: #{tpu_custom_call.1} parent=11 // pred_check
          %p270 = pneg %p178
        $region18: #{tpu_custom_call.1} parent=11 // pred_check_branch
          %272 = sbr.rel (%p270) target = $region20
        $region19: #{tpu_custom_call.1} parent=11 // pred_region
          _
        $region20: #{tpu_custom_call.1} parent=11 // pred_fallthru
          _
        // Predicated region
        $region21: #{tpu_custom_call.1} parent=11 // pred_check
          %p273 = pneg %p199
        $region22: #{tpu_custom_call.1} parent=11 // pred_check_branch
          %275 = sbr.rel (%p273) target = $region24
        $region23: #{tpu_custom_call.1} parent=11 // pred_region
          _
        $region24: #{tpu_custom_call.1} parent=11 // pred_fallthru
          _
        // Predicated region
        $region25: #{tpu_custom_call.1} parent=11 // pred_check
          %p276 = pneg %p220
        $region26: #{tpu_custom_call.1} parent=11 // pred_check_branch
          %278 = sbr.rel (%p276) target = $region28
        $region27: #{tpu_custom_call.1} parent=11 // pred_region
          _
        $region28: #{tpu_custom_call.1} parent=11 // pred_fallthru
          _
      $region12: #{tpu_custom_call.1} parent=5 // pred_fallthru
        _
      %p279 = scmp.lt.s32.totalorder %s15, 2
      // Predicated region
      $region29: #{tpu_custom_call.1} parent=5 // pred_check
        %p280 = pneg %p279
      $region30: #{tpu_custom_call.1} parent=5 // pred_check_branch
        %282 = sbr.rel (%p280) target = $region32
      $region31: #{tpu_custom_call.1} parent=5 // pred_region
        // Predicated region
        $region33: #{tpu_custom_call.1} parent=31 // pred_check
          %p283 = pneg %p47
        $region34: #{tpu_custom_call.1} parent=31 // pred_check_branch
          %285 = sbr.rel (%p283) target = $region36
        $region35: #{tpu_custom_call.1} parent=31 // pred_region
          %s286 = smul.u32 2, %s23
          %p287 = scmp.lt.s32.totalorder %s286, 3
          %s288 = scalar_select %p287, %s286, 3
          %s289 = scalar_lea.vmem %s0, %s288
          %s290 = smul.u32 2, %s23
        $region36: #{tpu_custom_call.1} parent=31 // pred_fallthru
          _
        // Predicated region
        $region37: #{tpu_custom_call.1} parent=31 // pred_check
          %p291 = pneg %p73
        $region38: #{tpu_custom_call.1} parent=31 // pred_check_branch
          %293 = sbr.rel (%p291) target = $region40
        $region39: #{tpu_custom_call.1} parent=31 // pred_region
          %s294 = smul.u32 2, %s23
          %p295 = scmp.lt.s32.totalorder %s294, 3
          %s296 = scalar_select %p295, %s294, 3
          %s297 = scalar_lea.vmem %s1, %s296
          %s298 = smul.u32 2, %s23
        $region40: #{tpu_custom_call.1} parent=31 // pred_fallthru
          _
        // Predicated region
        $region41: #{tpu_custom_call.1} parent=31 // pred_check
          %p299 = pneg %p99
        $region42: #{tpu_custom_call.1} parent=31 // pred_check_branch
          %301 = sbr.rel (%p299) target = $region44
        $region43: #{tpu_custom_call.1} parent=31 // pred_region
          %s302 = smul.u32 2, %s23
          %p303 = scmp.lt.s32.totalorder %s302, 3
          %s304 = scalar_select %p303, %s302, 3
          %s305 = scalar_lea.vmem %s2, %s304
          %s306 = smul.u32 2, %s23
        $region44: #{tpu_custom_call.1} parent=31 // pred_fallthru
          _
        // Predicated region
        $region45: #{tpu_custom_call.1} parent=31 // pred_check
          %p307 = pneg %p125
        $region46: #{tpu_custom_call.1} parent=31 // pred_check_branch
          %309 = sbr.rel (%p307) target = $region48
        $region47: #{tpu_custom_call.1} parent=31 // pred_region
          %s310 = smul.u32 32, %s23
          %p311 = scmp.lt.s32.totalorder %s310, 63
          %s312 = scalar_select %p311, %s310, 63
          %s313 = smul.addr %s312, 8
          %s314 = scalar_lea.vmem %s3, %s313
          %s315 = smul.u32 32, %s23
        $region48: #{tpu_custom_call.1} parent=31 // pred_fallthru
          _
      $region32: #{tpu_custom_call.1} parent=5 // pred_fallthru
        _
      %p316 = scmp.le.s32.totalorder 1, %s15
      %p317 = scmp.lt.s32.totalorder %s15, 3
      %p318 = pnand %p316, %p317
      %p319 = pneg %p318
      // Predicated region
      $region49: #{tpu_custom_call.1} parent=5 // pred_check
        _
      $region50: #{tpu_custom_call.1} parent=5 // pred_check_branch
        %321 = sbr.rel (%p318) target = $region52
      $region51: #{tpu_custom_call.1} parent=5 // pred_region
        %s322 = ssub.s32 %s15, 1
        %s323 = smul.u32 2, %s25
        %p324 = scmp.lt.s32.totalorder %s323, 3
        %s325 = scalar_select %p324, %s323, 3
        %s326 = scalar_lea.vmem %s0, %s325
        %p327 = pneg %p53
        %p328 = pneg %p50
        %s329 = smul.u32 2, %s25
        %p330 = scmp.lt.s32.totalorder %s329, 3
        %s331 = scalar_select %p330, %s329, 3
        %s332 = scalar_lea.vmem %s1, %s331
        %p333 = pneg %p79
        %p334 = pneg %p76
        %s335 = smul.u32 2, %s25
        %p336 = scmp.lt.s32.totalorder %s335, 3
        %s337 = scalar_select %p336, %s335, 3
        %s338 = scalar_lea.vmem %s2, %s337
        %p339 = pneg %p105
        %p340 = pneg %p102
        %s341 = smul.u32 32, %s25
        %p342 = scmp.lt.s32.totalorder %s341, 63
        %s343 = scalar_select %p342, %s341, 63
        %s344 = smul.addr %s343, 8
        %s345 = scalar_lea.vmem %s3, %s344
        %p346 = pneg %p131
        %p347 = pneg %p128
        %s348 = smul.u32 3, %s24
        %p349 = scmp.lt.s32.totalorder %s348, 2
        %s350 = scalar_select %p349, %s348, 2
        %s351 = smul.addr %s350, 8
        %s352 = scalar_lea.vmem %s4, %s351
        %p353 = pneg %p157
        %p354 = pneg %p154
        %p355 = pneg %p178
        %p356 = pneg %p175
        %p357 = pneg %p199
        %p358 = pneg %p196
        %p359 = pneg %p220
        %p360 = pneg %p217
        %p361 = pneg %p246
        %p362 = pneg %p243
        %s363 = smul.u32 2, %s25
        %p364 = scmp.lt.s32.totalorder %s363, 3
        %s365 = scalar_select %p364, %s363, 3
        %s366 = scalar_lea.vmem %s0, %s365
        %s367 = smul.u32 2, %s25
        %s368 = smul.u32 2, %s25
        %p369 = scmp.lt.s32.totalorder %s368, 3
        %s370 = scalar_select %p369, %s368, 3
        %s371 = scalar_lea.vmem %s1, %s370
        %s372 = smul.u32 2, %s25
        %s373 = smul.u32 2, %s25
        %p374 = scmp.lt.s32.totalorder %s373, 3
        %s375 = scalar_select %p374, %s373, 3
        %s376 = scalar_lea.vmem %s2, %s375
        %s377 = smul.u32 2, %s25
        %s378 = smul.u32 32, %s25
        %p379 = scmp.lt.s32.totalorder %s378, 63
        %s380 = scalar_select %p379, %s378, 63
        %s381 = smul.addr %s380, 8
        %s382 = scalar_lea.vmem %s3, %s381
        %s383 = smul.u32 32, %s25
        %s384 = smul.u32 3, %s24
        %p385 = scmp.lt.s32.totalorder %s384, 2
        %s386 = scalar_select %p385, %s384, 2
        %s387 = smul.addr %s386, 8
        %s388 = scalar_lea.vmem %s4, %s387
        %s389 = smul.u32 3, %s24
        %s390 = smul.u32 3, %s24
        %p391 = scmp.eq.s32.totalorder %s25, 0
        // Predicated region
        $region53: #{tpu_custom_call.1} parent=51 // pred_check
          %p392 = pneg %p391
        $region54: #{tpu_custom_call.1} parent=51 // pred_check_branch
          %394 = sbr.rel (%p392) target = $region56
        $region55: #{tpu_custom_call.1} parent=51 // pred_region
          %v395 = vld [vmem:[%s6] sm:$0x3]
          %v396 = vld [vmem:[%s388] sm:$0xff]
          %v397 = vld [vmem:[%s388 + $0x8] sm:$0xff]
          %v398 = vld [vmem:[%s388 + $0x10] sm:$0xff]
          %vm399 = vcmask 261120
          %v401 = vsel %vm399, %v395, 0
          %v404 = vsel %vm399, %v396, 0
          %v407 = vsel %vm399, %v397, 0
          %v410 = vsel %vm399, %v398, 0
          %412 = vmatpush.xpose.msra.mxu0 0.0
          %413 = vmatpush.xpose.msra.mxu0 0.0
          %414 = vmatpush.xpose.msra.mxu0 0.0
          %415 = vmatpush.xpose.msra.mxu0 0.0
          %416 = vmatpush.xpose.msra.mxu0 0.0
          %417 = vmatpush.xpose.msra.mxu0 0.0
          %418 = vmatpush.xpose.msra.mxu0 0.0
          %419 = vmatpush.xpose.msra.mxu0 0.0
          %420 = vmatpush.xpose.msra.mxu0 0.0
          %421 = vmatpush.xpose.msra.mxu0 0.0
          %422 = vmatpush.xpose.msra.mxu0 0.0
          %423 = vmatpush.xpose.msra.mxu0 0.0
          %424 = vmatpush.xpose.msra.mxu0 0.0
          %425 = vmatpush.xpose.msra.mxu0 %v410
          %426 = vmatpush.xpose.msra.mxu0 %v407
          %427 = vmatpush.xpose.msra.mxu0 %v404
          %428 = vmatmul.f32.gmra.mxu0 %v401
          %v429 = vpop.f32.mrf.mxu0
          %v430 = vadd.f32 0.0, %v429
          %431 = vdwg.mxu0
          %vm432 = vcmask 189440
          %433 = vst.msk [vmem:[#allocation2] sm:$0x3] %vm432, %v430
          %v434 = vld [vmem:[%s7] sm:$0x1]
          %v435 = vld [vmem:[%s5] sm:$0xff]
          %v436 = vld [vmem:[%s5 + $0x8] sm:$0xff]
          %437 = vmatpush.xpose.msra.mxu0 0.0
          %438 = vmatpush.xpose.msra.mxu0 0.0
          %439 = vmatpush.xpose.msra.mxu0 0.0
          %440 = vmatpush.xpose.msra.mxu0 0.0
          %441 = vmatpush.xpose.msra.mxu0 0.0
          %442 = vmatpush.xpose.msra.mxu0 0.0
          %443 = vmatpush.xpose.msra.mxu0 0.0
          %444 = vmatpush.xpose.msra.mxu0 0.0
          %445 = vmatpush.xpose.msra.mxu0 0.0
          %446 = vmatpush.xpose.msra.mxu0 0.0
          %447 = vmatpush.xpose.msra.mxu0 0.0
          %448 = vmatpush.xpose.msra.mxu0 0.0
          %449 = vmatpush.xpose.msra.mxu0 0.0
          %450 = vmatpush.xpose.msra.mxu0 0.0
          %451 = vmatpush.xpose.msra.mxu0 %v436
          %452 = vmatpush.xpose.msra.mxu0 %v435
          %453 = vmatmul.f32.gmra.mxu0 %v434
          %v454 = vpop.f32.mrf.mxu0
          %v455 = vadd.f32 0.0, %v454
          %456 = vdwg.mxu0
          %vm457 = vcmask 122880
          %458 = vst.msk [vmem:[#allocation3] sm:$0x1] %vm457, %v455
          %vm459 = vcmask 15360
          %460 = vst.msk [vmem:[#allocation4] sm:$0xff] %vm459, -1e+30
          %461 = vst.msk [vmem:[#allocation4 + $0x8] sm:$0xff] %vm459, -1e+30
          %462 = vst.msk [vmem:[#allocation4 + $0x10] sm:$0xff] %vm459, -1e+30
          %463 = vst [vmem:[#allocation5] sm:$0xff] 0.0
          %464 = vst [vmem:[#allocation5 + $0x8] sm:$0xff] 0.0
          %465 = vst [vmem:[#allocation5 + $0x10] sm:$0xff] 0.0
          %466 = vst [vmem:[#allocation6] sm:$0xff] 0.0
          %467 = vst [vmem:[#allocation6 + $0x8] sm:$0xff] 0.0
          %468 = vst [vmem:[#allocation6 + $0x10] sm:$0xff] 0.0
        $region56: #{tpu_custom_call.1} parent=51 // pred_fallthru
          _
        %s469 = smul.u32 %s24, 24
        %v470 = vld [vmem:[%s366] sm:$0x3]
        %v471 = vstv %s469
        %v472 = vsub.s32 %v470, %v471
        %v473 = vld [vmem:[%s371] sm:$0x3]
        %v474 = vsub.s32 %v473, %v471
        %v475 = vld [vmem:[%s376] sm:$0x3]
        %v476 = vld [vmem:[%s382] sm:$0xff]
        %v477 = vld [vmem:[%s382 + $0x8] sm:$0xff]
        %v478 = vld [vmem:[%s382 + $0x10] sm:$0xff]
        %v479 = vld [vmem:[%s382 + $0x18] sm:$0xff]
        %v480 = vld [vmem:[%s382 + $0x20] sm:$0xff]
        %v481 = vld [vmem:[%s382 + $0x28] sm:$0xff]
        %v482 = vld [vmem:[%s382 + $0x30] sm:$0xff]
        %v483 = vld [vmem:[%s382 + $0x38] sm:$0xff]
        %v484 = vld [vmem:[%s382 + $0x40] sm:$0xff]
        %v485 = vld [vmem:[%s382 + $0x48] sm:$0xff]
        %v486 = vld [vmem:[%s382 + $0x50] sm:$0xff]
        %v487 = vld [vmem:[%s382 + $0x58] sm:$0xff]
        %v488 = vld [vmem:[%s382 + $0x60] sm:$0xff]
        %v489 = vld [vmem:[%s382 + $0x68] sm:$0xff]
        %v490 = vld [vmem:[%s382 + $0x70] sm:$0xff]
        %v491 = vld [vmem:[%s382 + $0x78] sm:$0xff]
        %v492 = vld [vmem:[%s382 + $0x80] sm:$0xff]
        %v493 = vld [vmem:[%s382 + $0x88] sm:$0xff]
        %v494 = vld [vmem:[%s382 + $0x90] sm:$0xff]
        %v495 = vld [vmem:[%s382 + $0x98] sm:$0xff]
        %v496 = vld [vmem:[%s382 + $0xa0] sm:$0xff]
        %v497 = vld [vmem:[%s382 + $0xa8] sm:$0xff]
        %v498 = vld [vmem:[%s382 + $0xb0] sm:$0xff]
        %v499 = vld [vmem:[%s382 + $0xb8] sm:$0xff]
        %v500 = vld [vmem:[%s382 + $0xc0] sm:$0xff]
        %v501 = vld [vmem:[%s382 + $0xc8] sm:$0xff]
        %v502 = vld [vmem:[%s382 + $0xd0] sm:$0xff]
        %v503 = vld [vmem:[%s382 + $0xd8] sm:$0xff]
        %v504 = vld [vmem:[%s382 + $0xe0] sm:$0xff]
        %v505 = vld [vmem:[%s382 + $0xe8] sm:$0xff]
        %v506 = vld [vmem:[%s382 + $0xf0] sm:$0xff]
        %v507 = vld [vmem:[%s382 + $0xf8] sm:$0xff]
        %v508 = vlaneseq
        %v509 = vshrl.u32 %v508, 7
        %v510 = vadd.s32 %v509, 8
        %v511 = vadd.s32 %v509, 16
        %v512 = vlaneseq
        %v513 = vand.u32 %v512, 127
        %v514 = vperm.slane %v472, 0
        %v515 = vperm.slane %v472, 1
        %vm516 = vcmp.eq.s32.totalorder %v509, %v514
        %vm517 = vcmp.eq.s32.totalorder %v509, %v515
        %vm518 = vcmp.eq.s32.totalorder %v510, %v514
        %vm519 = vcmp.eq.s32.totalorder %v510, %v515
        %vm520 = vcmp.eq.s32.totalorder %v511, %v514
        %vm521 = vcmp.eq.s32.totalorder %v511, %v515
        %v522 = vperm.slane %v474, 0
        %v523 = vperm.slane %v474, 1
        %vm524 = vcmp.eq.s32.totalorder %v509, %v522
        %vm525 = vcmp.eq.s32.totalorder %v509, %v523
        %vm526 = vcmp.eq.s32.totalorder %v510, %v522
        %vm527 = vcmp.eq.s32.totalorder %v510, %v523
        %vm528 = vcmp.eq.s32.totalorder %v511, %v522
        %vm529 = vcmp.eq.s32.totalorder %v511, %v523
        %v530 = vsel %vm516, 1, 0
        %v531 = vsel %vm517, 1, 0
        %v532 = vsel %vm518, 1, 0
        %v533 = vsel %vm519, 1, 0
        %v534 = vsel %vm520, 1, 0
        %v535 = vsel %vm521, 1, 0
        %v536 = vcvt.s32.f32 %v530
        %v537 = vcvt.s32.f32 %v531
        %v538 = vcvt.s32.f32 %v532
        %v539 = vcvt.s32.f32 %v533
        %v540 = vcvt.s32.f32 %v534
        %v541 = vcvt.s32.f32 %v535
        %v542 = vsel %vm524, 1, 0
        %v543 = vsel %vm525, 1, 0
        %v544 = vsel %vm526, 1, 0
        %v545 = vsel %vm527, 1, 0
        %v546 = vsel %vm528, 1, 0
        %v547 = vsel %vm529, 1, 0
        %v548 = vcvt.s32.f32 %v542
        %v549 = vcvt.s32.f32 %v543
        %v550 = vcvt.s32.f32 %v544
        %v551 = vcvt.s32.f32 %v545
        %v552 = vcvt.s32.f32 %v546
        %v553 = vcvt.s32.f32 %v547
        %v554 = vperm.slane %v475, 0
        %v555 = vperm.slane %v475, 1
        %vm556 = vcmp.eq.s32.totalorder %v509, %v554
        %vm557 = vcmp.eq.s32.totalorder %v509, %v555
        %vm558 = vcmp.eq.s32.totalorder %v510, %v554
        %vm559 = vcmp.eq.s32.totalorder %v510, %v555
        %v560 = vsel %vm556, 1, 0
        %v561 = vsel %vm557, 1, 0
        %v562 = vsel %vm558, 1, 0
        %v563 = vsel %vm559, 1, 0
        %v564 = vcvt.s32.f32 %v560
        %v565 = vcvt.s32.f32 %v561
        %v566 = vcvt.s32.f32 %v562
        %v567 = vcvt.s32.f32 %v563
        %568 = vset.pattern.permute.xlu0 0
        %569 = vperm.xlu0 %568, %v476
        %v570 = vpop.permute.xlu0 %569
        %571 = vset.pattern.permute.xlu0 0
        %572 = vperm.xlu0 %571, %v477
        %v573 = vpop.permute.xlu0 %572
        %574 = vset.pattern.permute.xlu0 0
        %575 = vperm.xlu0 %574, %v478
        %v576 = vpop.permute.xlu0 %575
        %577 = vset.pattern.permute.xlu0 0
        %578 = vperm.xlu0 %577, %v479
        %v579 = vpop.permute.xlu0 %578
        %580 = vset.pattern.permute.xlu0 0
        %581 = vperm.xlu0 %580, %v480
        %v582 = vpop.permute.xlu0 %581
        %583 = vset.pattern.permute.xlu0 0
        %584 = vperm.xlu0 %583, %v481
        %v585 = vpop.permute.xlu0 %584
        %586 = vset.pattern.permute.xlu0 0
        %587 = vperm.xlu0 %586, %v482
        %v588 = vpop.permute.xlu0 %587
        %589 = vset.pattern.permute.xlu0 0
        %590 = vperm.xlu0 %589, %v483
        %v591 = vpop.permute.xlu0 %590
        %592 = vset.pattern.permute.xlu0 0
        %593 = vperm.xlu0 %592, %v484
        %v594 = vpop.permute.xlu0 %593
        %595 = vset.pattern.permute.xlu0 0
        %596 = vperm.xlu0 %595, %v485
        %v597 = vpop.permute.xlu0 %596
        %598 = vset.pattern.permute.xlu0 0
        %599 = vperm.xlu0 %598, %v486
        %v600 = vpop.permute.xlu0 %599
        %601 = vset.pattern.permute.xlu0 0
        %602 = vperm.xlu0 %601, %v487
        %v603 = vpop.permute.xlu0 %602
        %604 = vset.pattern.permute.xlu0 0
        %605 = vperm.xlu0 %604, %v488
        %v606 = vpop.permute.xlu0 %605
        %607 = vset.pattern.permute.xlu0 0
        %608 = vperm.xlu0 %607, %v489
        %v609 = vpop.permute.xlu0 %608
        %610 = vset.pattern.permute.xlu0 0
        %611 = vperm.xlu0 %610, %v490
        %v612 = vpop.permute.xlu0 %611
        %613 = vset.pattern.permute.xlu0 0
        %614 = vperm.xlu0 %613, %v491
        %v615 = vpop.permute.xlu0 %614
        %616 = vset.pattern.permute.xlu0 0
        %617 = vperm.xlu0 %616, %v492
        %v618 = vpop.permute.xlu0 %617
        %619 = vset.pattern.permute.xlu0 0
        %620 = vperm.xlu0 %619, %v493
        %v621 = vpop.permute.xlu0 %620
        %622 = vset.pattern.permute.xlu0 0
        %623 = vperm.xlu0 %622, %v494
        %v624 = vpop.permute.xlu0 %623
        %625 = vset.pattern.permute.xlu0 0
        %626 = vperm.xlu0 %625, %v495
        %v627 = vpop.permute.xlu0 %626
        %628 = vset.pattern.permute.xlu0 0
        %629 = vperm.xlu0 %628, %v496
        %v630 = vpop.permute.xlu0 %629
        %631 = vset.pattern.permute.xlu0 0
        %632 = vperm.xlu0 %631, %v497
        %v633 = vpop.permute.xlu0 %632
        %634 = vset.pattern.permute.xlu0 0
        %635 = vperm.xlu0 %634, %v498
        %v636 = vpop.permute.xlu0 %635
        %637 = vset.pattern.permute.xlu0 0
        %638 = vperm.xlu0 %637, %v499
        %v639 = vpop.permute.xlu0 %638
        %640 = vset.pattern.permute.xlu0 0
        %641 = vperm.xlu0 %640, %v500
        %v642 = vpop.permute.xlu0 %641
        %643 = vset.pattern.permute.xlu0 0
        %644 = vperm.xlu0 %643, %v501
        %v645 = vpop.permute.xlu0 %644
        %646 = vset.pattern.permute.xlu0 0
        %647 = vperm.xlu0 %646, %v502
        %v648 = vpop.permute.xlu0 %647
        %649 = vset.pattern.permute.xlu0 0
        %650 = vperm.xlu0 %649, %v503
        %v651 = vpop.permute.xlu0 %650
        %652 = vset.pattern.permute.xlu0 0
        %653 = vperm.xlu0 %652, %v504
        %v654 = vpop.permute.xlu0 %653
        %655 = vset.pattern.permute.xlu0 0
        %656 = vperm.xlu0 %655, %v505
        %v657 = vpop.permute.xlu0 %656
        %658 = vset.pattern.permute.xlu0 0
        %659 = vperm.xlu0 %658, %v506
        %v660 = vpop.permute.xlu0 %659
        %661 = vset.pattern.permute.xlu0 0
        %662 = vperm.xlu0 %661, %v507
        %v663 = vpop.permute.xlu0 %662
        %vm664 = vcmp.eq.s32.totalorder %v513, %v570
        %vm665 = vcmp.eq.s32.totalorder %v513, %v573
        %vm666 = vcmp.eq.s32.totalorder %v513, %v576
        %vm667 = vcmp.eq.s32.totalorder %v513, %v579
        %vm668 = vcmp.eq.s32.totalorder %v513, %v582
        %vm669 = vcmp.eq.s32.totalorder %v513, %v585
        %vm670 = vcmp.eq.s32.totalorder %v513, %v588
        %vm671 = vcmp.eq.s32.totalorder %v513, %v591
        %vm672 = vcmp.eq.s32.totalorder %v513, %v594
        %vm673 = vcmp.eq.s32.totalorder %v513, %v597
        %vm674 = vcmp.eq.s32.totalorder %v513, %v600
        %vm675 = vcmp.eq.s32.totalorder %v513, %v603
        %vm676 = vcmp.eq.s32.totalorder %v513, %v606
        %vm677 = vcmp.eq.s32.totalorder %v513, %v609
        %vm678 = vcmp.eq.s32.totalorder %v513, %v612
        %vm679 = vcmp.eq.s32.totalorder %v513, %v615
        %vm680 = vcmp.eq.s32.totalorder %v513, %v618
        %vm681 = vcmp.eq.s32.totalorder %v513, %v621
        %vm682 = vcmp.eq.s32.totalorder %v513, %v624
        %vm683 = vcmp.eq.s32.totalorder %v513, %v627
        %vm684 = vcmp.eq.s32.totalorder %v513, %v630
        %vm685 = vcmp.eq.s32.totalorder %v513, %v633
        %vm686 = vcmp.eq.s32.totalorder %v513, %v636
        %vm687 = vcmp.eq.s32.totalorder %v513, %v639
        %vm688 = vcmp.eq.s32.totalorder %v513, %v642
        %vm689 = vcmp.eq.s32.totalorder %v513, %v645
        %vm690 = vcmp.eq.s32.totalorder %v513, %v648
        %vm691 = vcmp.eq.s32.totalorder %v513, %v651
        %vm692 = vcmp.eq.s32.totalorder %v513, %v654
        %vm693 = vcmp.eq.s32.totalorder %v513, %v657
        %vm694 = vcmp.eq.s32.totalorder %v513, %v660
        %vm695 = vcmp.eq.s32.totalorder %v513, %v663
        %v696 = vsel %vm664, 1, 0
        %v697 = vsel %vm665, 1, 0
        %v698 = vsel %vm666, 1, 0
        %v699 = vsel %vm667, 1, 0
        %v700 = vsel %vm668, 1, 0
        %v701 = vsel %vm669, 1, 0
        %v702 = vsel %vm670, 1, 0
        %v703 = vsel %vm671, 1, 0
        %v704 = vsel %vm672, 1, 0
        %v705 = vsel %vm673, 1, 0
        %v706 = vsel %vm674, 1, 0
        %v707 = vsel %vm675, 1, 0
        %v708 = vsel %vm676, 1, 0
        %v709 = vsel %vm677, 1, 0
        %v710 = vsel %vm678, 1, 0
        %v711 = vsel %vm679, 1, 0
        %v712 = vsel %vm680, 1, 0
        %v713 = vsel %vm681, 1, 0
        %v714 = vsel %vm682, 1, 0
        %v715 = vsel %vm683, 1, 0
        %v716 = vsel %vm684, 1, 0
        %v717 = vsel %vm685, 1, 0
        %v718 = vsel %vm686, 1, 0
        %v719 = vsel %vm687, 1, 0
        %v720 = vsel %vm688, 1, 0
        %v721 = vsel %vm689, 1, 0
        %v722 = vsel %vm690, 1, 0
        %v723 = vsel %vm691, 1, 0
        %v724 = vsel %vm692, 1, 0
        %v725 = vsel %vm693, 1, 0
        %v726 = vsel %vm694, 1, 0
        %v727 = vsel %vm695, 1, 0
        %v728 = vcvt.s32.f32 %v696
        %v729 = vcvt.s32.f32 %v697
        %v730 = vcvt.s32.f32 %v698
        %v731 = vcvt.s32.f32 %v699
        %v732 = vcvt.s32.f32 %v700
        %v733 = vcvt.s32.f32 %v701
        %v734 = vcvt.s32.f32 %v702
        %v735 = vcvt.s32.f32 %v703
        %v736 = vcvt.s32.f32 %v704
        %v737 = vcvt.s32.f32 %v705
        %v738 = vcvt.s32.f32 %v706
        %v739 = vcvt.s32.f32 %v707
        %v740 = vcvt.s32.f32 %v708
        %v741 = vcvt.s32.f32 %v709
        %v742 = vcvt.s32.f32 %v710
        %v743 = vcvt.s32.f32 %v711
        %v744 = vcvt.s32.f32 %v712
        %v745 = vcvt.s32.f32 %v713
        %v746 = vcvt.s32.f32 %v714
        %v747 = vcvt.s32.f32 %v715
        %v748 = vcvt.s32.f32 %v716
        %v749 = vcvt.s32.f32 %v717
        %v750 = vcvt.s32.f32 %v718
        %v751 = vcvt.s32.f32 %v719
        %v752 = vcvt.s32.f32 %v720
        %v753 = vcvt.s32.f32 %v721
        %v754 = vcvt.s32.f32 %v722
        %v755 = vcvt.s32.f32 %v723
        %v756 = vcvt.s32.f32 %v724
        %v757 = vcvt.s32.f32 %v725
        %v758 = vcvt.s32.f32 %v726
        %v759 = vcvt.s32.f32 %v727
        %v760 = vld [vmem:[#allocation2] sm:$0x1]
        %v761 = vld [vmem:[#allocation2 + $0x1] sm:$0x1]
        %v762 = vld [vmem:[#allocation3] sm:$0x1]
        %vm763 = vcmask 130048
        %v765 = vsel %vm763, %v762, 0
        %767 = vmatpush.msra.mxu0 0.0
        %768 = vmatpush.msra.mxu0 0.0
        %769 = vmatpush.msra.mxu0 0.0
        %770 = vmatpush.msra.mxu0 0.0
        %771 = vmatpush.msra.mxu0 0.0
        %772 = vmatpush.msra.mxu0 0.0
        %773 = vmatpush.msra.mxu0 0.0
        %774 = vmatpush.msra.mxu0 0.0
        %775 = vmatpush.msra.mxu0 0.0
        %776 = vmatpush.msra.mxu0 0.0
        %777 = vmatpush.msra.mxu0 0.0
        %778 = vmatpush.msra.mxu0 0.0
        %779 = vmatpush.msra.mxu0 0.0
        %780 = vmatpush.msra.mxu0 0.0
        %781 = vmatpush.msra.mxu0 %v566
        %782 = vmatpush.msra.mxu0 %v564
        %783 = vmatmul.f32.gmra.mxu0 %v765
        %v784 = vpop.f32.mrf.mxu0
        %v785 = vadd.f32 0.0, %v784
        %786 = vdwg.mxu0
        %787 = vmatpush.msra.mxu0 0.0
        %788 = vmatpush.msra.mxu0 0.0
        %789 = vmatpush.msra.mxu0 0.0
        %790 = vmatpush.msra.mxu0 0.0
        %791 = vmatpush.msra.mxu0 0.0
        %792 = vmatpush.msra.mxu0 0.0
        %793 = vmatpush.msra.mxu0 0.0
        %794 = vmatpush.msra.mxu0 0.0
        %795 = vmatpush.msra.mxu0 0.0
        %796 = vmatpush.msra.mxu0 0.0
        %797 = vmatpush.msra.mxu0 0.0
        %798 = vmatpush.msra.mxu0 0.0
        %799 = vmatpush.msra.mxu0 0.0
        %800 = vmatpush.msra.mxu0 0.0
        %801 = vmatpush.msra.mxu0 %v567
        %802 = vmatpush.msra.mxu0 %v565
        %803 = vmatmul.f32.gmra.mxu0 %v765
        %v804 = vpop.f32.mrf.mxu0
        %v805 = vadd.f32 0.0, %v804
        %806 = vdwg.mxu0
        %vm807 = vcmask 195584
        %v809 = vsel %vm807, %v760, 0
        %811 = vmatpush.msra.mxu0 0.0
        %812 = vmatpush.msra.mxu0 0.0
        %813 = vmatpush.msra.mxu0 0.0
        %814 = vmatpush.msra.mxu0 0.0
        %815 = vmatpush.msra.mxu0 0.0
        %816 = vmatpush.msra.mxu0 0.0
        %817 = vmatpush.msra.mxu0 0.0
        %818 = vmatpush.msra.mxu0 0.0
        %819 = vmatpush.msra.mxu0 0.0
        %820 = vmatpush.msra.mxu0 0.0
        %821 = vmatpush.msra.mxu0 0.0
        %822 = vmatpush.msra.mxu0 0.0
        %823 = vmatpush.msra.mxu0 0.0
        %824 = vmatpush.msra.mxu0 %v540
        %825 = vmatpush.msra.mxu0 %v538
        %826 = vmatpush.msra.mxu0 %v536
        %827 = vmatmul.f32.gmra.mxu0 %v809
        %v828 = vpop.f32.mrf.mxu0
        %v829 = vadd.f32 %v785, %v828
        %830 = vdwg.mxu0
        %831 = vmatpush.msra.mxu0 0.0
        %832 = vmatpush.msra.mxu0 0.0
        %833 = vmatpush.msra.mxu0 0.0
        %834 = vmatpush.msra.mxu0 0.0
        %835 = vmatpush.msra.mxu0 0.0
        %836 = vmatpush.msra.mxu0 0.0
        %837 = vmatpush.msra.mxu0 0.0
        %838 = vmatpush.msra.mxu0 0.0
        %839 = vmatpush.msra.mxu0 0.0
        %840 = vmatpush.msra.mxu0 0.0
        %841 = vmatpush.msra.mxu0 0.0
        %842 = vmatpush.msra.mxu0 0.0
        %843 = vmatpush.msra.mxu0 0.0
        %844 = vmatpush.msra.mxu0 %v541
        %845 = vmatpush.msra.mxu0 %v539
        %846 = vmatpush.msra.mxu0 %v537
        %847 = vmatmul.f32.gmra.mxu0 %v809
        %v848 = vpop.f32.mrf.mxu0
        %v849 = vadd.f32 %v805, %v848
        %850 = vdwg.mxu0
        %vm851 = vcmp.gt.f32.partialorder %v829, 0.0
        %vm852 = vcmp.gt.f32.partialorder %v849, 0.0
        %v853 = vmul.f32 %v829, 0.01
        %v854 = vmul.f32 %v849, 0.01
        %v855 = vsel %vm851, %v829, %v853
        %v856 = vsel %vm852, %v849, %v854
        %v858 = vsel %vm807, %v761, 0
        %860 = vmatpush.msra.mxu0 0.0
        %861 = vmatpush.msra.mxu0 0.0
        %862 = vmatpush.msra.mxu0 0.0
        %863 = vmatpush.msra.mxu0 0.0
        %864 = vmatpush.msra.mxu0 0.0
        %865 = vmatpush.msra.mxu0 0.0
        %866 = vmatpush.msra.mxu0 0.0
        %867 = vmatpush.msra.mxu0 0.0
        %868 = vmatpush.msra.mxu0 0.0
        %869 = vmatpush.msra.mxu0 0.0
        %870 = vmatpush.msra.mxu0 0.0
        %871 = vmatpush.msra.mxu0 0.0
        %872 = vmatpush.msra.mxu0 0.0
        %873 = vmatpush.msra.mxu0 %v552
        %874 = vmatpush.msra.mxu0 %v550
        %875 = vmatpush.msra.mxu0 %v548
        %876 = vmatmul.f32.gmra.mxu0 %v858
        %v877 = vpop.f32.mrf.mxu0
        %v878 = vadd.f32 %v785, %v877
        %879 = vdwg.mxu0
        %880 = vmatpush.msra.mxu0 0.0
        %881 = vmatpush.msra.mxu0 0.0
        %882 = vmatpush.msra.mxu0 0.0
        %883 = vmatpush.msra.mxu0 0.0
        %884 = vmatpush.msra.mxu0 0.0
        %885 = vmatpush.msra.mxu0 0.0
        %886 = vmatpush.msra.mxu0 0.0
        %887 = vmatpush.msra.mxu0 0.0
        %888 = vmatpush.msra.mxu0 0.0
        %889 = vmatpush.msra.mxu0 0.0
        %890 = vmatpush.msra.mxu0 0.0
        %891 = vmatpush.msra.mxu0 0.0
        %892 = vmatpush.msra.mxu0 0.0
        %893 = vmatpush.msra.mxu0 %v553
        %894 = vmatpush.msra.mxu0 %v551
        %895 = vmatpush.msra.mxu0 %v549
        %896 = vmatmul.f32.gmra.mxu0 %v858
        %v897 = vpop.f32.mrf.mxu0
        %v898 = vadd.f32 %v805, %v897
        %899 = vdwg.mxu0
        %vm900 = vcmp.gt.f32.partialorder %v878, 0.0
        %vm901 = vcmp.gt.f32.partialorder %v898, 0.0
        %v902 = vmul.f32 %v878, 0.01
        %v903 = vmul.f32 %v898, 0.01
        %v904 = vsel %vm900, %v878, %v902
        %v905 = vsel %vm901, %v898, %v903
        %v906 = vld [vmem:[%s5] sm:$0xff]
        %v907 = vld [vmem:[%s5 + $0x8] sm:$0xff]
        %v909 = vsel %vm763, %v728, 0
        %v912 = vsel %vm763, %v729, 0
        %v915 = vsel %vm763, %v730, 0
        %v918 = vsel %vm763, %v731, 0
        %v921 = vsel %vm763, %v732, 0
        %v924 = vsel %vm763, %v733, 0
        %v927 = vsel %vm763, %v734, 0
        %v930 = vsel %vm763, %v735, 0
        %v933 = vsel %vm763, %v736, 0
        %v936 = vsel %vm763, %v737, 0
        %v939 = vsel %vm763, %v738, 0
        %v942 = vsel %vm763, %v739, 0
        %v945 = vsel %vm763, %v740, 0
        %v948 = vsel %vm763, %v741, 0
        %v951 = vsel %vm763, %v742, 0
        %v954 = vsel %vm763, %v743, 0
        %v957 = vsel %vm763, %v744, 0
        %v960 = vsel %vm763, %v745, 0
        %v963 = vsel %vm763, %v746, 0
        %v966 = vsel %vm763, %v747, 0
        %v969 = vsel %vm763, %v748, 0
        %v972 = vsel %vm763, %v749, 0
        %v975 = vsel %vm763, %v750, 0
        %v978 = vsel %vm763, %v751, 0
        %v981 = vsel %vm763, %v752, 0
        %v984 = vsel %vm763, %v753, 0
        %v987 = vsel %vm763, %v754, 0
        %v990 = vsel %vm763, %v755, 0
        %v993 = vsel %vm763, %v756, 0
        %v996 = vsel %vm763, %v757, 0
        %v999 = vsel %vm763, %v758, 0
        %v1002 = vsel %vm763, %v759, 0
        %1004 = vmatpush.msra.mxu0 0.0
        %1005 = vmatpush.msra.mxu0 0.0
        %1006 = vmatpush.msra.mxu0 0.0
        %1007 = vmatpush.msra.mxu0 0.0
        %1008 = vmatpush.msra.mxu0 0.0
        %1009 = vmatpush.msra.mxu0 0.0
        %1010 = vmatpush.msra.mxu0 0.0
        %1011 = vmatpush.msra.mxu0 0.0
        %1012 = vmatpush.msra.mxu0 0.0
        %1013 = vmatpush.msra.mxu0 0.0
        %1014 = vmatpush.msra.mxu0 0.0
        %1015 = vmatpush.msra.mxu0 0.0
        %1016 = vmatpush.msra.mxu0 0.0
        %1017 = vmatpush.msra.mxu0 0.0
        %1018 = vmatpush.msra.mxu0 %v907
        %1019 = vmatpush.msra.mxu0 %v906
        %1020 = vmatmul.f32.gmra.mxu0 %v909
        %v1021 = vpop.f32.mrf.mxu0
        %v1022 = vadd.f32 0.0, %v1021
        %1023 = vmatmul.f32.gmra.mxu0 %v912
        %v1024 = vpop.f32.mrf.mxu0
        %v1025 = vadd.f32 0.0, %v1024
        %1026 = vmatmul.f32.gmra.mxu0 %v915
        %v1027 = vpop.f32.mrf.mxu0
        %v1028 = vadd.f32 0.0, %v1027
        %1029 = vmatmul.f32.gmra.mxu0 %v918
        %v1030 = vpop.f32.mrf.mxu0
        %v1031 = vadd.f32 0.0, %v1030
        %1032 = vmatmul.f32.gmra.mxu0 %v921
        %v1033 = vpop.f32.mrf.mxu0
        %v1034 = vadd.f32 0.0, %v1033
        %1035 = vmatmul.f32.gmra.mxu0 %v924
        %v1036 = vpop.f32.mrf.mxu0
        %v1037 = vadd.f32 0.0, %v1036
        %1038 = vmatmul.f32.gmra.mxu0 %v927
        %v1039 = vpop.f32.mrf.mxu0
        %v1040 = vadd.f32 0.0, %v1039
        %1041 = vmatmul.f32.gmra.mxu0 %v930
        %v1042 = vpop.f32.mrf.mxu0
        %v1043 = vadd.f32 0.0, %v1042
        %1044 = vmatmul.f32.gmra.mxu0 %v933
        %v1045 = vpop.f32.mrf.mxu0
        %v1046 = vadd.f32 0.0, %v1045
        %1047 = vmatmul.f32.gmra.mxu0 %v936
        %v1048 = vpop.f32.mrf.mxu0
        %v1049 = vadd.f32 0.0, %v1048
        %1050 = vmatmul.f32.gmra.mxu0 %v939
        %v1051 = vpop.f32.mrf.mxu0
        %v1052 = vadd.f32 0.0, %v1051
        %1053 = vmatmul.f32.gmra.mxu0 %v942
        %v1054 = vpop.f32.mrf.mxu0
        %v1055 = vadd.f32 0.0, %v1054
        %1056 = vmatmul.f32.gmra.mxu0 %v945
        %v1057 = vpop.f32.mrf.mxu0
        %v1058 = vadd.f32 0.0, %v1057
        %1059 = vmatmul.f32.gmra.mxu0 %v948
        %v1060 = vpop.f32.mrf.mxu0
        %v1061 = vadd.f32 0.0, %v1060
        %1062 = vmatmul.f32.gmra.mxu0 %v951
        %v1063 = vpop.f32.mrf.mxu0
        %v1064 = vadd.f32 0.0, %v1063
        %1065 = vmatmul.f32.gmra.mxu0 %v954
        %v1066 = vpop.f32.mrf.mxu0
        %v1067 = vadd.f32 0.0, %v1066
        %1068 = vmatmul.f32.gmra.mxu0 %v957
        %v1069 = vpop.f32.mrf.mxu0
        %v1070 = vadd.f32 0.0, %v1069
        %1071 = vmatmul.f32.gmra.mxu0 %v960
        %v1072 = vpop.f32.mrf.mxu0
        %v1073 = vadd.f32 0.0, %v1072
        %1074 = vmatmul.f32.gmra.mxu0 %v963
        %v1075 = vpop.f32.mrf.mxu0
        %v1076 = vadd.f32 0.0, %v1075
        %1077 = vmatmul.f32.gmra.mxu0 %v966
        %v1078 = vpop.f32.mrf.mxu0
        %v1079 = vadd.f32 0.0, %v1078
        %1080 = vmatmul.f32.gmra.mxu0 %v969
        %v1081 = vpop.f32.mrf.mxu0
        %v1082 = vadd.f32 0.0, %v1081
        %1083 = vmatmul.f32.gmra.mxu0 %v972
        %v1084 = vpop.f32.mrf.mxu0
        %v1085 = vadd.f32 0.0, %v1084
        %1086 = vmatmul.f32.gmra.mxu0 %v975
        %v1087 = vpop.f32.mrf.mxu0
        %v1088 = vadd.f32 0.0, %v1087
        %1089 = vmatmul.f32.gmra.mxu0 %v978
        %v1090 = vpop.f32.mrf.mxu0
        %v1091 = vadd.f32 0.0, %v1090
        %1092 = vmatmul.f32.gmra.mxu0 %v981
        %v1093 = vpop.f32.mrf.mxu0
        %v1094 = vadd.f32 0.0, %v1093
        %1095 = vmatmul.f32.gmra.mxu0 %v984
        %v1096 = vpop.f32.mrf.mxu0
        %v1097 = vadd.f32 0.0, %v1096
        %1098 = vmatmul.f32.gmra.mxu0 %v987
        %v1099 = vpop.f32.mrf.mxu0
        %v1100 = vadd.f32 0.0, %v1099
        %1101 = vmatmul.f32.gmra.mxu0 %v990
        %v1102 = vpop.f32.mrf.mxu0
        %v1103 = vadd.f32 0.0, %v1102
        %1104 = vmatmul.f32.gmra.mxu0 %v993
        %v1105 = vpop.f32.mrf.mxu0
        %v1106 = vadd.f32 0.0, %v1105
        %1107 = vmatmul.f32.gmra.mxu0 %v996
        %v1108 = vpop.f32.mrf.mxu0
        %v1109 = vadd.f32 0.0, %v1108
        %1110 = vmatmul.f32.gmra.mxu0 %v999
        %v1111 = vpop.f32.mrf.mxu0
        %v1112 = vadd.f32 0.0, %v1111
        %1113 = vmatmul.f32.gmra.mxu0 %v1002
        %v1114 = vpop.f32.mrf.mxu0
        %v1115 = vadd.f32 0.0, %v1114
        %1116 = vdwg.mxu0
        %v1117 = vld [vmem:[#allocation4] sm:$0xff]
        %v1118 = vld [vmem:[#allocation4 + $0x8] sm:$0xff]
        %v1119 = vld [vmem:[#allocation4 + $0x10] sm:$0xff]
        %v1120 = vperm.slane %v855, 0
        %v1121 = vperm.slane %v856, 0
        %v1122 = vsel %vm516, %v1120, -1e+30
        %v1123 = vsel %vm517, %v1121, -1e+30
        %v1124 = vsel %vm518, %v1120, -1e+30
        %v1125 = vsel %vm519, %v1121, -1e+30
        %v1126 = vsel %vm520, %v1120, -1e+30
        %v1127 = vsel %vm521, %v1121, -1e+30
        %v1128 = vmax.f32 %v1122, %v1123
        %1129 = vmax.xlane.f32.xlu0 %v1128
        %v1130 = vpop.xlane.xlu0 %1129
        %v1131 = vmax.f32 %v1124, %v1125
        %1132 = vmax.xlane.f32.xlu0 %v1131
        %v1133 = vpop.xlane.xlu0 %1132
        %v1134 = vmax.f32 %v1126, %v1127
        %1135 = vmax.xlane.f32.xlu0 %v1134
        %v1136 = vpop.xlane.xlu0 %1135
        %v1137 = vmax.f32 %v1117, %v1130
        %v1138 = vmax.f32 %v1118, %v1133
        %v1139 = vmax.f32 %v1119, %v1136
        %v1140 = vsub.f32 %v1117, %v1137
        %v1141 = vsub.f32 %v1118, %v1138
        %v1142 = vsub.f32 %v1119, %v1139
        %v1143 = vmul.f32 %v1140, 1.442695
        %v1144 = vpow.pop %v1143
        %v1145 = vmul.f32 %v1141, 1.442695
        %v1146 = vpow.pop %v1145
        %v1147 = vmul.f32 %v1142, 1.442695
        %v1148 = vpow.pop %v1147
        %1150 = vset.pattern.permute.xlu0 0
        %1151 = vperm.xlu0 %1150, %v1137
        %v1152 = vpop.permute.xlu0 %1151
        %1155 = vset.pattern.permute.xlu0 0
        %1156 = vperm.xlu0 %1155, %v1138
        %v1157 = vpop.permute.xlu0 %1156
        %1160 = vset.pattern.permute.xlu0 0
        %1161 = vperm.xlu0 %1160, %v1139
        %v1162 = vpop.permute.xlu0 %1161
        %v1164 = vmul.f32 %v536, %v1152
        %v1165 = vmul.f32 %v537, %v1152
        %v1166 = vmul.f32 %v538, %v1157
        %v1167 = vmul.f32 %v539, %v1157
        %v1168 = vmul.f32 %v540, %v1162
        %v1169 = vmul.f32 %v541, %v1162
        %v1171 = vsel %vm807, 1.0, 0
        %1173 = vmatpush.msra.mxu0 0.0
        %1174 = vmatpush.msra.mxu0 0.0
        %1175 = vmatpush.msra.mxu0 0.0
        %1176 = vmatpush.msra.mxu0 0.0
        %1177 = vmatpush.msra.mxu0 0.0
        %1178 = vmatpush.msra.mxu0 0.0
        %1179 = vmatpush.msra.mxu0 0.0
        %1180 = vmatpush.msra.mxu0 0.0
        %1181 = vmatpush.msra.mxu0 0.0
        %1182 = vmatpush.msra.mxu0 0.0
        %1183 = vmatpush.msra.mxu0 0.0
        %1184 = vmatpush.msra.mxu0 0.0
        %1185 = vmatpush.msra.mxu0 0.0
        %1186 = vmatpush.msra.mxu0 %v1168
        %1187 = vmatpush.msra.mxu0 %v1166
        %1188 = vmatpush.msra.mxu0 %v1164
        %1189 = vmatmul.f32.gmra.mxu0 %v1171
        %v1190 = vpop.f32.mrf.mxu0
        %v1191 = vadd.f32 0.0, %v1190
        %1192 = vdwg.mxu0
        %1193 = vmatpush.msra.mxu0 0.0
        %1194 = vmatpush.msra.mxu0 0.0
        %1195 = vmatpush.msra.mxu0 0.0
        %1196 = vmatpush.msra.mxu0 0.0
        %1197 = vmatpush.msra.mxu0 0.0
        %1198 = vmatpush.msra.mxu0 0.0
        %1199 = vmatpush.msra.mxu0 0.0
        %1200 = vmatpush.msra.mxu0 0.0
        %1201 = vmatpush.msra.mxu0 0.0
        %1202 = vmatpush.msra.mxu0 0.0
        %1203 = vmatpush.msra.mxu0 0.0
        %1204 = vmatpush.msra.mxu0 0.0
        %1205 = vmatpush.msra.mxu0 0.0
        %1206 = vmatpush.msra.mxu0 %v1169
        %1207 = vmatpush.msra.mxu0 %v1167
        %1208 = vmatpush.msra.mxu0 %v1165
        %1209 = vmatmul.f32.gmra.mxu0 %v1171
        %v1210 = vpop.f32.mrf.mxu0
        %v1211 = vadd.f32 0.0, %v1210
        %1212 = vdwg.mxu0
        %v1213 = vsub.f32 %v855, %v1191
        %v1214 = vsub.f32 %v856, %v1211
        %v1215 = vmul.f32 %v1213, 1.442695
        %v1216 = vpow.pop %v1215
        %v1217 = vmul.f32 %v1214, 1.442695
        %v1218 = vpow.pop %v1217
        %v1219 = vperm.slane %v1216, 0
        %v1220 = vperm.slane %v1218, 0
        %v1221 = vsel %vm516, %v1219, 0.0
        %v1222 = vsel %vm517, %v1220, 0.0
        %v1223 = vsel %vm518, %v1219, 0.0
        %v1224 = vsel %vm519, %v1220, 0.0
        %v1225 = vsel %vm520, %v1219, 0.0
        %v1226 = vsel %vm521, %v1220, 0.0
        %v1227 = vperm.slane %v904, 0
        %v1228 = vperm.slane %v905, 0
        %v1229 = vsel %vm524, %v1227, -1e+30
        %v1230 = vsel %vm525, %v1228, -1e+30
        %v1231 = vsel %vm526, %v1227, -1e+30
        %v1232 = vsel %vm527, %v1228, -1e+30
        %v1233 = vsel %vm528, %v1227, -1e+30
        %v1234 = vsel %vm529, %v1228, -1e+30
        %v1235 = vmax.f32 %v1229, %v1230
        %1236 = vmax.xlane.f32.xlu0 %v1235
        %v1237 = vpop.xlane.xlu0 %1236
        %v1238 = vmax.f32 %v1231, %v1232
        %1239 = vmax.xlane.f32.xlu0 %v1238
        %v1240 = vpop.xlane.xlu0 %1239
        %v1241 = vmax.f32 %v1233, %v1234
        %1242 = vmax.xlane.f32.xlu0 %v1241
        %v1243 = vpop.xlane.xlu0 %1242
        %v1244 = vmax.f32 %v1117, %v1237
        %v1245 = vmax.f32 %v1118, %v1240
        %v1246 = vmax.f32 %v1119, %v1243
        %v1247 = vsub.f32 %v1117, %v1244
        %v1248 = vsub.f32 %v1118, %v1245
        %v1249 = vsub.f32 %v1119, %v1246
        %v1250 = vmul.f32 %v1247, 1.442695
        %v1251 = vpow.pop %v1250
        %v1252 = vmul.f32 %v1248, 1.442695
        %v1253 = vpow.pop %v1252
        %v1254 = vmul.f32 %v1249, 1.442695
        %v1255 = vpow.pop %v1254
        %1257 = vset.pattern.permute.xlu0 1
        %1258 = vperm.xlu0 %1257, %v1244
        %v1259 = vpop.permute.xlu0 %1258
        %1262 = vset.pattern.permute.xlu0 1
        %1263 = vperm.xlu0 %1262, %v1245
        %v1264 = vpop.permute.xlu0 %1263
        %1267 = vset.pattern.permute.xlu0 1
        %1268 = vperm.xlu0 %1267, %v1246
        %v1269 = vpop.permute.xlu0 %1268
        %v1271 = vmul.f32 %v548, %v1259
        %v1272 = vmul.f32 %v549, %v1259
        %v1273 = vmul.f32 %v550, %v1264
        %v1274 = vmul.f32 %v551, %v1264
        %v1275 = vmul.f32 %v552, %v1269
        %v1276 = vmul.f32 %v553, %v1269
        %1277 = vmatpush.msra.mxu0 0.0
        %1278 = vmatpush.msra.mxu0 0.0
        %1279 = vmatpush.msra.mxu0 0.0
        %1280 = vmatpush.msra.mxu0 0.0
        %1281 = vmatpush.msra.mxu0 0.0
        %1282 = vmatpush.msra.mxu0 0.0
        %1283 = vmatpush.msra.mxu0 0.0
        %1284 = vmatpush.msra.mxu0 0.0
        %1285 = vmatpush.msra.mxu0 0.0
        %1286 = vmatpush.msra.mxu0 0.0
        %1287 = vmatpush.msra.mxu0 0.0
        %1288 = vmatpush.msra.mxu0 0.0
        %1289 = vmatpush.msra.mxu0 0.0
        %1290 = vmatpush.msra.mxu0 %v1275
        %1291 = vmatpush.msra.mxu0 %v1273
        %1292 = vmatpush.msra.mxu0 %v1271
        %1293 = vmatmul.f32.gmra.mxu0 %v1171
        %v1294 = vpop.f32.mrf.mxu0
        %v1295 = vadd.f32 0.0, %v1294
        %1296 = vdwg.mxu0
        %1297 = vmatpush.msra.mxu0 0.0
        %1298 = vmatpush.msra.mxu0 0.0
        %1299 = vmatpush.msra.mxu0 0.0
        %1300 = vmatpush.msra.mxu0 0.0
        %1301 = vmatpush.msra.mxu0 0.0
        %1302 = vmatpush.msra.mxu0 0.0
        %1303 = vmatpush.msra.mxu0 0.0
        %1304 = vmatpush.msra.mxu0 0.0
        %1305 = vmatpush.msra.mxu0 0.0
        %1306 = vmatpush.msra.mxu0 0.0
        %1307 = vmatpush.msra.mxu0 0.0
        %1308 = vmatpush.msra.mxu0 0.0
        %1309 = vmatpush.msra.mxu0 0.0
        %1310 = vmatpush.msra.mxu0 %v1276
        %1311 = vmatpush.msra.mxu0 %v1274
        %1312 = vmatpush.msra.mxu0 %v1272
        %1313 = vmatmul.f32.gmra.mxu0 %v1171
        %v1314 = vpop.f32.mrf.mxu0
        %v1315 = vadd.f32 0.0, %v1314
        %1316 = vdwg.mxu0
        %v1317 = vsub.f32 %v904, %v1295
        %v1318 = vsub.f32 %v905, %v1315
        %v1319 = vmul.f32 %v1317, 1.442695
        %v1320 = vpow.pop %v1319
        %v1321 = vmul.f32 %v1318, 1.442695
        %v1322 = vpow.pop %v1321
        %v1323 = vperm.slane %v1320, 0
        %v1324 = vperm.slane %v1322, 0
        %v1325 = vsel %vm524, %v1323, 0.0
        %v1326 = vsel %vm525, %v1324, 0.0
        %v1327 = vsel %vm526, %v1323, 0.0
        %v1328 = vsel %vm527, %v1324, 0.0
        %v1329 = vsel %vm528, %v1323, 0.0
        %v1330 = vsel %vm529, %v1324, 0.0
        %v1331 = vld [vmem:[#allocation5] sm:$0xff]
        %v1332 = vld [vmem:[#allocation5 + $0x8] sm:$0xff]
        %v1333 = vld [vmem:[#allocation5 + $0x10] sm:$0xff]
        %1335 = vset.pattern.permute.xlu0 0
        %1336 = vperm.xlu0 %1335, %v1144
        %v1337 = vpop.permute.xlu0 %1336
        %1340 = vset.pattern.permute.xlu0 0
        %1341 = vperm.xlu0 %1340, %v1146
        %v1342 = vpop.permute.xlu0 %1341
        %1345 = vset.pattern.permute.xlu0 0
        %1346 = vperm.xlu0 %1345, %v1148
        %v1347 = vpop.permute.xlu0 %1346
        %v1349 = vmul.f32 %v1337, %v1331
        %v1350 = vmul.f32 %v1342, %v1332
        %v1351 = vmul.f32 %v1347, %v1333
        %1352 = vmatpush.msra.mxu0 %v1067
        %1353 = vmatpush.msra.mxu0 %v1064
        %1354 = vmatpush.msra.mxu0 %v1061
        %1355 = vmatpush.msra.mxu0 %v1058
        %1356 = vmatpush.msra.mxu0 %v1055
        %1357 = vmatpush.msra.mxu0 %v1052
        %1358 = vmatpush.msra.mxu0 %v1049
        %1359 = vmatpush.msra.mxu0 %v1046
        %1360 = vmatpush.msra.mxu0 %v1043
        %1361 = vmatpush.msra.mxu0 %v1040
        %1362 = vmatpush.msra.mxu0 %v1037
        %1363 = vmatpush.msra.mxu0 %v1034
        %1364 = vmatpush.msra.mxu0 %v1031
        %1365 = vmatpush.msra.mxu0 %v1028
        %1366 = vmatpush.msra.mxu0 %v1025
        %1367 = vmatpush.msra.mxu0 %v1022
        %1368 = vmatmul.f32.gmra.mxu0 %v1221
        %v1369 = vpop.f32.mrf.mxu0
        %v1370 = vadd.f32 0.0, %v1369
        %1371 = vmatmul.f32.gmra.mxu0 %v1223
        %v1372 = vpop.f32.mrf.mxu0
        %v1373 = vadd.f32 0.0, %v1372
        %1374 = vmatmul.f32.gmra.mxu0 %v1225
        %v1375 = vpop.f32.mrf.mxu0
        %v1376 = vadd.f32 0.0, %v1375
        %1377 = vdwg.mxu0
        %1378 = vmatpush.msra.mxu0 %v1115
        %1379 = vmatpush.msra.mxu0 %v1112
        %1380 = vmatpush.msra.mxu0 %v1109
        %1381 = vmatpush.msra.mxu0 %v1106
        %1382 = vmatpush.msra.mxu0 %v1103
        %1383 = vmatpush.msra.mxu0 %v1100
        %1384 = vmatpush.msra.mxu0 %v1097
        %1385 = vmatpush.msra.mxu0 %v1094
        %1386 = vmatpush.msra.mxu0 %v1091
        %1387 = vmatpush.msra.mxu0 %v1088
        %1388 = vmatpush.msra.mxu0 %v1085
        %1389 = vmatpush.msra.mxu0 %v1082
        %1390 = vmatpush.msra.mxu0 %v1079
        %1391 = vmatpush.msra.mxu0 %v1076
        %1392 = vmatpush.msra.mxu0 %v1073
        %1393 = vmatpush.msra.mxu0 %v1070
        %1394 = vmatmul.f32.gmra.mxu0 %v1222
        %v1395 = vpop.f32.mrf.mxu0
        %v1396 = vadd.f32 %v1370, %v1395
        %1397 = vmatmul.f32.gmra.mxu0 %v1224
        %v1398 = vpop.f32.mrf.mxu0
        %v1399 = vadd.f32 %v1373, %v1398
        %1400 = vmatmul.f32.gmra.mxu0 %v1226
        %v1401 = vpop.f32.mrf.mxu0
        %v1402 = vadd.f32 %v1376, %v1401
        %1403 = vdwg.mxu0
        %v1404 = vadd.f32 %v1349, %v1396
        %v1405 = vadd.f32 %v1350, %v1399
        %v1406 = vadd.f32 %v1351, %v1402
        %1407 = vst [vmem:[#allocation5] sm:$0xff] %v1404
        %1408 = vst [vmem:[#allocation5 + $0x8] sm:$0xff] %v1405
        %1409 = vst [vmem:[#allocation5 + $0x10] sm:$0xff] %v1406
        %v1410 = vld [vmem:[#allocation6] sm:$0xff]
        %v1411 = vld [vmem:[#allocation6 + $0x8] sm:$0xff]
        %v1412 = vld [vmem:[#allocation6 + $0x10] sm:$0xff]
        %1414 = vset.pattern.permute.xlu0 1
        %1415 = vperm.xlu0 %1414, %v1251
        %v1416 = vpop.permute.xlu0 %1415
        %1419 = vset.pattern.permute.xlu0 1
        %1420 = vperm.xlu0 %1419, %v1253
        %v1421 = vpop.permute.xlu0 %1420
        %1424 = vset.pattern.permute.xlu0 1
        %1425 = vperm.xlu0 %1424, %v1255
        %v1426 = vpop.permute.xlu0 %1425
        %v1428 = vmul.f32 %v1416, %v1410
        %v1429 = vmul.f32 %v1421, %v1411
        %v1430 = vmul.f32 %v1426, %v1412
        %1431 = vmatpush.msra.mxu0 %v1067
        %1432 = vmatpush.msra.mxu0 %v1064
        %1433 = vmatpush.msra.mxu0 %v1061
        %1434 = vmatpush.msra.mxu0 %v1058
        %1435 = vmatpush.msra.mxu0 %v1055
        %1436 = vmatpush.msra.mxu0 %v1052
        %1437 = vmatpush.msra.mxu0 %v1049
        %1438 = vmatpush.msra.mxu0 %v1046
        %1439 = vmatpush.msra.mxu0 %v1043
        %1440 = vmatpush.msra.mxu0 %v1040
        %1441 = vmatpush.msra.mxu0 %v1037
        %1442 = vmatpush.msra.mxu0 %v1034
        %1443 = vmatpush.msra.mxu0 %v1031
        %1444 = vmatpush.msra.mxu0 %v1028
        %1445 = vmatpush.msra.mxu0 %v1025
        %1446 = vmatpush.msra.mxu0 %v1022
        %1447 = vmatmul.f32.gmra.mxu0 %v1325
        %v1448 = vpop.f32.mrf.mxu0
        %v1449 = vadd.f32 0.0, %v1448
        %1450 = vmatmul.f32.gmra.mxu0 %v1327
        %v1451 = vpop.f32.mrf.mxu0
        %v1452 = vadd.f32 0.0, %v1451
        %1453 = vmatmul.f32.gmra.mxu0 %v1329
        %v1454 = vpop.f32.mrf.mxu0
        %v1455 = vadd.f32 0.0, %v1454
        %1456 = vdwg.mxu0
        %1457 = vmatpush.msra.mxu0 %v1115
        %1458 = vmatpush.msra.mxu0 %v1112
        %1459 = vmatpush.msra.mxu0 %v1109
        %1460 = vmatpush.msra.mxu0 %v1106
        %1461 = vmatpush.msra.mxu0 %v1103
        %1462 = vmatpush.msra.mxu0 %v1100
        %1463 = vmatpush.msra.mxu0 %v1097
        %1464 = vmatpush.msra.mxu0 %v1094
        %1465 = vmatpush.msra.mxu0 %v1091
        %1466 = vmatpush.msra.mxu0 %v1088
        %1467 = vmatpush.msra.mxu0 %v1085
        %1468 = vmatpush.msra.mxu0 %v1082
        %1469 = vmatpush.msra.mxu0 %v1079
        %1470 = vmatpush.msra.mxu0 %v1076
        %1471 = vmatpush.msra.mxu0 %v1073
        %1472 = vmatpush.msra.mxu0 %v1070
        %1473 = vmatmul.f32.gmra.mxu0 %v1326
        %v1474 = vpop.f32.mrf.mxu0
        %v1475 = vadd.f32 %v1449, %v1474
        %1476 = vmatmul.f32.gmra.mxu0 %v1328
        %v1477 = vpop.f32.mrf.mxu0
        %v1478 = vadd.f32 %v1452, %v1477
        %1479 = vmatmul.f32.gmra.mxu0 %v1330
        %v1480 = vpop.f32.mrf.mxu0
        %v1481 = vadd.f32 %v1455, %v1480
        %1482 = vdwg.mxu0
        %v1483 = vadd.f32 %v1428, %v1475
        %v1484 = vadd.f32 %v1429, %v1478
        %v1485 = vadd.f32 %v1430, %v1481
        %1486 = vst [vmem:[#allocation6] sm:$0xff] %v1483
        %1487 = vst [vmem:[#allocation6 + $0x8] sm:$0xff] %v1484
        %1488 = vst [vmem:[#allocation6 + $0x10] sm:$0xff] %v1485
        %vm1489 = vcmask 7168
        %v1490 = vsel %vm1489, %v1137, %v1244
        %v1491 = vsel %vm1489, %v1138, %v1245
        %v1492 = vsel %vm1489, %v1139, %v1246
        %vm1493 = vcmask 15360
        %1494 = vst.msk [vmem:[#allocation4] sm:$0xff] %vm1493, %v1490
        %1495 = vst.msk [vmem:[#allocation4 + $0x8] sm:$0xff] %vm1493, %v1491
        %1496 = vst.msk [vmem:[#allocation4 + $0x10] sm:$0xff] %vm1493, %v1492
        %p1497 = scmp.eq.s32.totalorder %s25, 1
        // Predicated region
        $region57: #{tpu_custom_call.1} parent=51 // pred_check
          %p1498 = pneg %p1497
        $region58: #{tpu_custom_call.1} parent=51 // pred_check_branch
          %1500 = sbr.rel (%p1498) target = $region60
        $region59: #{tpu_custom_call.1} parent=51 // pred_region
          %v1501 = vld [vmem:[#allocation5] sm:$0xff]
          %v1502 = vld [vmem:[#allocation5 + $0x8] sm:$0xff]
          %v1503 = vld [vmem:[#allocation5 + $0x10] sm:$0xff]
          %v1504 = vld [vmem:[#allocation6] sm:$0xff]
          %v1505 = vld [vmem:[#allocation6 + $0x8] sm:$0xff]
          %v1506 = vld [vmem:[#allocation6 + $0x10] sm:$0xff]
          %v1507 = vadd.f32 %v1501, 1e-16
          %v1508 = vadd.f32 %v1502, 1e-16
          %v1509 = vadd.f32 %v1503, 1e-16
          %v1510 = vrcp.pop %v1507
          %v1511 = vmul.f32 %v1507, %v1510
          %v1512 = vsub.f32 1.0, %v1511
          %v1513 = vmul.f32 %v1510, %v1512
          %v1514 = vadd.f32 %v1510, %v1513
          %vm1515 = vweird.f32 %v1507
          %vm1516 = vweird.f32 %v1510
          %vm1517 = vmor %vm1515, %vm1516
          %v1518 = vsel %vm1517, %v1510, %v1514
          %v1519 = vand.u32 2147483647, %v1507
          %vm1520 = vcmp.eq.f32.partialorder %v1519, 8.507059e+37
          %v1521 = vand.u32 %v1507, 2147483648
          %v1522 = vor.u32 1.1754944e-38, %v1521
          %v1523 = vsel %vm1520, %v1522, %v1518
          %v1524 = vrcp.pop %v1508
          %v1525 = vmul.f32 %v1508, %v1524
          %v1526 = vsub.f32 1.0, %v1525
          %v1527 = vmul.f32 %v1524, %v1526
          %v1528 = vadd.f32 %v1524, %v1527
          %vm1529 = vweird.f32 %v1508
          %vm1530 = vweird.f32 %v1524
          %vm1531 = vmor %vm1529, %vm1530
          %v1532 = vsel %vm1531, %v1524, %v1528
          %v1533 = vand.u32 2147483647, %v1508
          %vm1534 = vcmp.eq.f32.partialorder %v1533, 8.507059e+37
          %v1535 = vand.u32 %v1508, 2147483648
          %v1536 = vor.u32 1.1754944e-38, %v1535
          %v1537 = vsel %vm1534, %v1536, %v1532
          %v1538 = vrcp.pop %v1509
          %v1539 = vmul.f32 %v1509, %v1538
          %v1540 = vsub.f32 1.0, %v1539
          %v1541 = vmul.f32 %v1538, %v1540
          %v1542 = vadd.f32 %v1538, %v1541
          %vm1543 = vweird.f32 %v1509
          %vm1544 = vweird.f32 %v1538
          %vm1545 = vmor %vm1543, %vm1544
          %v1546 = vsel %vm1545, %v1538, %v1542
          %v1547 = vand.u32 2147483647, %v1509
          %vm1548 = vcmp.eq.f32.partialorder %v1547, 8.507059e+37
          %v1549 = vand.u32 %v1509, 2147483648
          %v1550 = vor.u32 1.1754944e-38, %v1549
          %v1551 = vsel %vm1548, %v1550, %v1546
          %v1552 = vadd.f32 %v1504, 1e-16
          %v1553 = vadd.f32 %v1505, 1e-16
          %v1554 = vadd.f32 %v1506, 1e-16
          %v1555 = vrcp.pop %v1552
          %v1556 = vmul.f32 %v1552, %v1555
          %v1557 = vsub.f32 1.0, %v1556
          %v1558 = vmul.f32 %v1555, %v1557
          %v1559 = vadd.f32 %v1555, %v1558
          %vm1560 = vweird.f32 %v1552
          %vm1561 = vweird.f32 %v1555
          %vm1562 = vmor %vm1560, %vm1561
          %v1563 = vsel %vm1562, %v1555, %v1559
          %v1564 = vand.u32 2147483647, %v1552
          %vm1565 = vcmp.eq.f32.partialorder %v1564, 8.507059e+37
          %v1566 = vand.u32 %v1552, 2147483648
          %v1567 = vor.u32 1.1754944e-38, %v1566
          %v1568 = vsel %vm1565, %v1567, %v1563
          %v1569 = vrcp.pop %v1553
          %v1570 = vmul.f32 %v1553, %v1569
          %v1571 = vsub.f32 1.0, %v1570
          %v1572 = vmul.f32 %v1569, %v1571
          %v1573 = vadd.f32 %v1569, %v1572
          %vm1574 = vweird.f32 %v1553
          %vm1575 = vweird.f32 %v1569
          %vm1576 = vmor %vm1574, %vm1575
          %v1577 = vsel %vm1576, %v1569, %v1573
          %v1578 = vand.u32 2147483647, %v1553
          %vm1579 = vcmp.eq.f32.partialorder %v1578, 8.507059e+37
          %v1580 = vand.u32 %v1553, 2147483648
          %v1581 = vor.u32 1.1754944e-38, %v1580
          %v1582 = vsel %vm1579, %v1581, %v1577
          %v1583 = vrcp.pop %v1554
          %v1584 = vmul.f32 %v1554, %v1583
          %v1585 = vsub.f32 1.0, %v1584
          %v1586 = vmul.f32 %v1583, %v1585
          %v1587 = vadd.f32 %v1583, %v1586
          %vm1588 = vweird.f32 %v1554
          %vm1589 = vweird.f32 %v1583
          %vm1590 = vmor %vm1588, %vm1589
          %v1591 = vsel %vm1590, %v1583, %v1587
          %v1592 = vand.u32 2147483647, %v1554
          %vm1593 = vcmp.eq.f32.partialorder %v1592, 8.507059e+37
          %v1594 = vand.u32 %v1554, 2147483648
          %v1595 = vor.u32 1.1754944e-38, %v1594
          %v1596 = vsel %vm1593, %v1595, %v1591
          %1598 = vset.pattern.permute.xlu0 32
          %1599 = vperm.xlu0 %1598, %v1523
          %v1600 = vpop.permute.xlu0 %1599
          %1603 = vset.pattern.permute.xlu0 32
          %1604 = vperm.xlu0 %1603, %v1537
          %v1605 = vpop.permute.xlu0 %1604
          %1608 = vset.pattern.permute.xlu0 32
          %1609 = vperm.xlu0 %1608, %v1551
          %v1610 = vpop.permute.xlu0 %1609
          %v1612 = vmul.f32 %v1501, %v1600
          %v1613 = vmul.f32 %v1502, %v1605
          %v1614 = vmul.f32 %v1503, %v1610
          %1615 = vst [vmem:[#allocation7] sm:$0xff] %v1612
          %1616 = vst [vmem:[#allocation7 + $0x10] sm:$0xff] %v1613
          %1617 = vst [vmem:[#allocation7 + $0x20] sm:$0xff] %v1614
          %1619 = vset.pattern.permute.xlu0 32
          %1620 = vperm.xlu0 %1619, %v1568
          %v1621 = vpop.permute.xlu0 %1620
          %1624 = vset.pattern.permute.xlu0 32
          %1625 = vperm.xlu0 %1624, %v1582
          %v1626 = vpop.permute.xlu0 %1625
          %1629 = vset.pattern.permute.xlu0 32
          %1630 = vperm.xlu0 %1629, %v1596
          %v1631 = vpop.permute.xlu0 %1630
          %v1633 = vmul.f32 %v1504, %v1621
          %v1634 = vmul.f32 %v1505, %v1626
          %v1635 = vmul.f32 %v1506, %v1631
          %1636 = vst [vmem:[#allocation7 + $0x8] sm:$0xff] %v1633
          %1637 = vst [vmem:[#allocation7 + $0x18] sm:$0xff] %v1634
          %1638 = vst [vmem:[#allocation7 + $0x28] sm:$0xff] %v1635
        $region60: #{tpu_custom_call.1} parent=51 // pred_fallthru
          _
        // Predicated region
        $region61: #{tpu_custom_call.1} parent=51 // pred_check
          %p1639 = pneg %p243
        $region62: #{tpu_custom_call.1} parent=51 // pred_check_branch
          %1641 = sbr.rel (%p1639) target = $region64
        $region63: #{tpu_custom_call.1} parent=51 // pred_region
          %s1642 = smul.u32 3, %s24
          %1644 = vsyncadd [#allocation8], 0
          %s1645 = smul.addr %s1642, 2
          %s1646 = smul.addr %s1645, 8
          %s1647 = scalar_lea.hbm %s8, %s1646
          %s1648 = sshll.u32 [#allocation7], 4
          %s1649 = int_to_ptr.vmem [resolvable:$true] %s1648
          %s1650 = sshll.u32 %s1647, 4
          %s1651 = int_to_ptr.hbm [resolvable:$true] %s1650
          %1656 = dma.vmem_to_hbm [thread:$0]  %s1649, 768, %s1651, [#allocation8], 256, 256, 16
        $region64: #{tpu_custom_call.1} parent=51 // pred_fallthru
          _
        // Predicated region
        $region65: #{tpu_custom_call.1} parent=51 // pred_check
          %p1657 = pneg %p243
        $region66: #{tpu_custom_call.1} parent=51 // pred_check_branch
          %1659 = sbr.rel (%p1657) target = $region68
        $region67: #{tpu_custom_call.1} parent=51 // pred_region
          %1661 = dma.done [#allocation8], 768
        $region68: #{tpu_custom_call.1} parent=51 // pred_fallthru
          _
      $region52: #{tpu_custom_call.1} parent=5 // pred_fallthru
        _
      %p1662 = scmp.le.s32.totalorder 2, %s15
      // Predicated region
      $region69: #{tpu_custom_call.1} parent=5 // pred_check
        %p1663 = pneg %p1662
      $region70: #{tpu_custom_call.1} parent=5 // pred_check_branch
        %1665 = sbr.rel (%p1663) target = $region72
      $region71: #{tpu_custom_call.1} parent=5 // pred_region
        %s1666 = ssub.s32 %s15, 2
      $region72: #{tpu_custom_call.1} parent=5 // pred_fallthru
        _
    $region6: #{tpu_custom_call.1} parent=1 // loop_footer
      %s19 = sadd.s32 1, %s15
    $region7: #{tpu_custom_call.1} parent=1 // loop_footer_branch
      %14 = sbr.rel target = $region3
    $region8: #{tpu_custom_call.1} parent=1 // loop_exit
      _
    %1667 = vsyncpa [#allocation8], 1
    %s1668 = scalar_lea.sflag [#allocation8], 1
    %1669 = vsyncpa %s1668, 1

</llo_original>
